<compile_context>
chip_gen: v7x
topology: tpu7x:2x2x1
jax: 0.10.0
libtpu: 0.0.40
codegen_flags: <defaults>
</compile_context>

<pallas_src>
import jax
import jax.numpy as jnp
from jax.experimental import pallas as pl
from jax.experimental.pallas import tpu as pltpu

# ---- model hyper-parameters (consistent with the module __init__) ----------
D = 32          # out_size
H = 4           # attention heads
K = 3           # cnn_kernel (odd -> 'same' padding)
EPS = 1e-5
HAS_RES = False  # module default

# ---- packed (D, D) weight-matrix indices (parameter container layout) ------
W_Q, W_K, W_V, W_O = 0, 1, 2, 3
W_F1A, W_F1B, W_F2A, W_F2B = 4, 5, 6, 7
W_PW1A, W_PW1B, W_PW2 = 8, 9, 10
NW = 11

# ---- packed (D,) vector indices (parameter container layout) ---------------
V_BQ, V_BK, V_BV, V_BO = 0, 1, 2, 3
V_LN1G, V_LN1B, V_LN2G, V_LN2B = 4, 5, 6, 7
V_LN3G, V_LN3B, V_LN4G, V_LN4B = 8, 9, 10, 11
V_F1B1, V_F1B2, V_F2B1, V_F2B2 = 12, 13, 14, 15
V_PW1BA, V_PW1BB, V_DWB = 16, 17, 18
V_BNG, V_BNB, V_BNM, V_BNV = 19, 20, 21, 22
V_PW2B = 23
NV = 24

# index order inside the stacked (6, D, D) matmul weights passed to the kernel
M_O, M_F1A, M_F1B, M_F2A, M_F2B, M_PW2 = range(6)

# index order inside the repacked / BN-folded (NR, D) vector bundle
R_BO = 0
R_LN1G, R_LN1B, R_LN2G, R_LN2B = 1, 2, 3, 4
R_LN3G, R_LN3B, R_LN4G, R_LN4B = 5, 6, 7, 8
R_F1B1, R_F1B2, R_F2B1, R_F2B2 = 9, 10, 11, 12
R_DWB, R_PW2B = 13, 14
NR = 15


def _sigmoid(z):
    # logistic via a single tanh: one EUP push per element (vs exp + vrcp).
    return 0.5 * jnp.tanh(0.5 * z) + 0.5


def _layer_norm(x, g, b):
    mu = jnp.mean(x, axis=-1, keepdims=True)
    var = jnp.mean((x - mu) ** 2, axis=-1, keepdims=True)
    return (x - mu) * jax.lax.rsqrt(var + EPS) * g + b


def squeezeformer_kernel(x_ref, mrow_ref, mcol_ref, wqkv_ref, bqkv_ref,
                         wpw1_ref, bpw1_ref, w6_ref, v_ref, dw_ref, o_ref):
    BB, T, _ = x_ref.shape
    N = BB * T
    dk = D // H

    # ---- hoist every parameter load once ------------------------------------
    wqkv = wqkv_ref[...]          # (D, 3D) bf16, fused Q|K|V (scale pre-folded)
    bqkv = bqkv_ref[...]          # (1, 3D) f32
    wpw1 = wpw1_ref[...]          # (D, 2D) bf16, fused pointwise-conv1 halves
    bpw1 = bpw1_ref[...]          # (1, 2D) f32
    w_o, w_f1a, w_f1b = w6_ref[M_O], w6_ref[M_F1A], w6_ref[M_F1B]
    w_f2a, w_f2b, w_pw2 = w6_ref[M_F2A], w6_ref[M_F2B], w6_ref[M_PW2]
    dw = dw_ref[...]              # (K, D) f32 depthwise filter (BN folded in)

    vv = v_ref[...]               # (NR, D) f32

    def vec(i):
        return vv[i:i + 1, :]

    b_o = vec(R_BO)
    ln1g, ln1b = vec(R_LN1G), vec(R_LN1B)
    ln2g, ln2b = vec(R_LN2G), vec(R_LN2B)
    ln3g, ln3b = vec(R_LN3G), vec(R_LN3B)
    ln4g, ln4b = vec(R_LN4G), vec(R_LN4B)
    f1b1, f1b2 = vec(R_F1B1), vec(R_F1B2)
    f2b1, f2b2 = vec(R_F2B1), vec(R_F2B2)
    dwb = vec(R_DWB)              # (dw_bias - bn_mean)*bn_scale + bn_beta
    pw2b = vec(R_PW2B)

    # ---- activations / masks -------------------------------------------------
    x0 = x_ref[...].astype(jnp.float32).reshape(N, D)          # (N, D)
    m_key = mrow_ref[...]                                       # (BB, 1, T) {0,1}
    kbias = (m_key - 1.0) * 1e30                                # additive key mask
    m_frame = mcol_ref[...].reshape(N, 1)                       # (N, 1)

    def mm(x, w):
        # bf16 MXU operands, f32 accumulation.
        return jnp.dot(x.astype(w.dtype), w, preferred_element_type=jnp.float32)

    # ---------------- multi-head self attention (dropout = identity) ---------
    qkv = mm(x0, wqkv) + bqkv                                   # (N, 3D) f32
    q = qkv[:, 0 * D:1 * D].reshape(BB, T, D).astype(jnp.bfloat16)
    k = qkv[:, 1 * D:2 * D].reshape(BB, T, D).astype(jnp.bfloat16)
    v = qkv[:, 2 * D:3 * D].reshape(BB, T, D).astype(jnp.bfloat16)

    lane = jax.lax.broadcasted_iota(jnp.int32, (1, 1, D), 2)

    ctx = jnp.zeros((BB, T, D), jnp.float32)
    for h in range(H):                                          # H = 4, unrolled
        hm = jnp.logical_and(lane >= h * dk,
                             lane < (h + 1) * dk).astype(jnp.bfloat16)
        # zeroing non-head lanes of q restricts the contraction to head h
        s = jnp.einsum('bqd,bkd->bqk', q * hm, k,
                       preferred_element_type=jnp.float32)
        s = s + kbias                                           # mask keys (add)
        s = s - jnp.max(s, axis=-1, keepdims=True)
        e = jnp.exp(s)
        p = e * pl.reciprocal(jnp.sum(e, axis=-1, keepdims=True), approx=True)
        p = p * m_key                                           # zero masked keys
        # head outputs land in disjoint lanes -> plain accumulate, no concat
        ctx = ctx + jnp.einsum('bqk,bkd->bqd', p.astype(jnp.bfloat16), v * hm,
                               preferred_element_type=jnp.float32)

    x_att = mm(ctx.reshape(N, D), w_o) + b_o
    xs = _layer_norm(x0 + x_att, ln1g, ln1b)

    # ---------------- FFN1: Linear -> ReLU -> Linear --------------------------
    h1 = jnp.maximum(mm(xs, w_f1a) + f1b1, 0.0)
    xs = _layer_norm(xs + mm(h1, w_f1b) + f1b2, ln2g, ln2b)

    # ---------------- convolution module --------------------------------------
    cg = xs * m_frame                                           # zero padded frames
    pw1 = mm(cg, wpw1) + bpw1                                   # (N, 2D)
    g = pw1[:, :D] * _sigmoid(pw1[:, D:])                       # GLU over halves

    # depthwise conv along T: sublane roll (XLU) + float edge masks; the masks
    # also kill cross-sequence bleed between the BB sequences in the block.
    # BatchNorm (eval) is pre-folded into dw / dwb, so swish follows directly.
    pad = (K - 1) // 2
    tpos = jax.lax.broadcasted_iota(jnp.int32, (BB, T, 1), 1).reshape(N, 1)
    dwc = g * dw[pad:pad + 1, :] + dwb                          # center tap
    for kk in range(K):
        off = kk - pad                                          # -1, 0, +1
        if off == 0:
            continue
        gs = pltpu.roll(g, shift=(-off) % N, axis=0)
        if off < 0:
            edge = (tpos >= -off).astype(jnp.float32)           # (N, 1)
        else:
            edge = (tpos <= T - 1 - off).astype(jnp.float32)
        dwc = dwc + gs * (edge * dw[kk:kk + 1, :])

    act = dwc * _sigmoid(dwc)                                   # swish
    conv_out = (mm(act, w_pw2) + pw2b) * m_frame                # pw conv2 + re-mask
    xs = _layer_norm(xs + conv_out, ln3g, ln3b)

    # ---------------- FFN2 -----------------------------------------------------
    h2 = jnp.maximum(mm(xs, w_f2a) + f2b1, 0.0)
    xs = _layer_norm(xs + mm(h2, w_f2b) + f2b2, ln4g, ln4b)

    if HAS_RES:
        xs = xs + x0

    # NOTE: a lane-dense (BB, T*D) out_spec would avoid masked vst.msk stores,
    # but needs an (N,32)->(BB,T*D) sublane->lane relayout in-kernel; deferred
    # pending bundle-dump confirmation per the review's own caveat.
    o_ref[...] = xs.reshape(BB, T, D).astype(o_ref.dtype)


def _choose_block_b(B, T, target_rows=1024):
    """Whole batch in a single grid step when it fits the ~1024-row target
    (the grid is a serial loop on 1-TC chips, so extra steps are pure
    ~0.35us/step overhead); otherwise the largest divisor of B that keeps
    BB*T <= target_rows (VMEM-friendly on v7x's 64 MiB)."""
    if B * T <= target_rows:
        return B
    best = 1
    for cand in range(1, B + 1):
        if B % cand == 0 and cand * T <= target_rows:
            best = cand
    return best


@jax.jit
def squeezeformer_layer(x, mask_row, W, V, DW):
    B, T, _ = x.shape
    BB = _choose_block_b(B, T)
    scale = 1.0 / float((D // H) ** 0.5)

    # ---- one-time parameter fusion / folding (free relative to the kernel) ---
    # fold 1/sqrt(dk) into the Q projection, fuse Q|K|V and the GLU halves,
    # and cast all MXU weight operands to bf16 (biases / LN params stay f32).
    Wqkv = jnp.concatenate([W[W_Q] * scale, W[W_K], W[W_V]],
                           axis=1).astype(jnp.bfloat16)                  # (D, 3D)
    Bqkv = jnp.concatenate([V[V_BQ] * scale, V[V_BK], V[V_BV]],
                           axis=0)[None]                                 # (1, 3D)
    Wpw1 = jnp.concatenate([W[W_PW1A], W[W_PW1B]],
                           axis=1).astype(jnp.bfloat16)                  # (D, 2D)
    Bpw1 = jnp.concatenate([V[V_PW1BA], V[V_PW1BB]], axis=0)[None]       # (1, 2D)
    W6 = jnp.stack([W[W_O], W[W_F1A], W[W_F1B],
                    W[W_F2A], W[W_F2B], W[W_PW2]],
                   axis=0).astype(jnp.bfloat16)                          # (6, D, D)

    # fold eval-mode BatchNorm into the depthwise filter / bias
    bn_scale = V[V_BNG] * jax.lax.rsqrt(V[V_BNV] + EPS)                  # (D,)
    DWf = DW * bn_scale[None, :]                                         # (K, D)
    dwb_f = (V[V_DWB] - V[V_BNM]) * bn_scale + V[V_BNB]                  # (D,)

    Vk = jnp.stack([V[V_BO],
                    V[V_LN1G], V[V_LN1B], V[V_LN2G], V[V_LN2B],
                    V[V_LN3G], V[V_LN3B], V[V_LN4G], V[V_LN4B],
                    V[V_F1B1], V[V_F1B2], V[V_F2B1], V[V_F2B2],
                    dwb_f, V[V_PW2B]], axis=0)                           # (NR, D)

    mask_col = jnp.transpose(mask_row, (0, 2, 1))                        # (B, T, 1)

    # explicit scoped-VMEM budget sized to the block (clamped at the v7x cap)
    rows = BB * T
    vmem_est = 2 * (24 * rows * D * 4 + 4 * rows * T * 4) + 4 * rows * (T + D) * 4
    vmem_limit = int(min(64 * 1024 * 1024, max(32 * 1024 * 1024, vmem_est)))

    out = pl.pallas_call(
        squeezeformer_kernel,
        out_shape=jax.ShapeDtypeStruct((B, T, D), x.dtype),
        grid_spec=pltpu.PrefetchScalarGridSpec(
            num_scalar_prefetch=0,
            grid=(B // BB,),
            in_specs=[
                pl.BlockSpec((BB, T, D), lambda b: (b, 0, 0)),   # x
                pl.BlockSpec((BB, 1, T), lambda b: (b, 0, 0)),   # mask (key form)
                pl.BlockSpec((BB, T, 1), lambda b: (b, 0, 0)),   # mask (frame form)
                pl.BlockSpec((D, 3 * D), lambda b: (0, 0)),      # fused W_qkv
                pl.BlockSpec((1, 3 * D), lambda b: (0, 0)),      # fused b_qkv
                pl.BlockSpec((D, 2 * D), lambda b: (0, 0)),      # fused W_pw1
                pl.BlockSpec((1, 2 * D), lambda b: (0, 0)),      # fused b_pw1
                pl.BlockSpec((6, D, D), lambda b: (0, 0, 0)),    # other matrices
                pl.BlockSpec((NR, D), lambda b: (0, 0)),         # packed vectors
                pl.BlockSpec((K, D), lambda b: (0, 0)),          # depthwise filter
            ],
            out_specs=pl.BlockSpec((BB, T, D), lambda b: (b, 0, 0)),
        ),
        compiler_params=pltpu.CompilerParams(
            dimension_semantics=("parallel",),
            vmem_limit_bytes=vmem_limit),
    )(x, mask_row, mask_col, Wqkv, Bqkv, Wpw1, Bpw1, W6, Vk, DWf)
    return out, mask_row


def make_params(key):
    ks = jax.random.split(key, 5)
    W = 0.08 * jax.random.normal(ks[0], (NW, D, D), jnp.float32)
    V = 0.05 * jax.random.normal(ks[1], (NV, D), jnp.float32)
    # layer-norm / batch-norm scales near 1
    for idx, kk in zip((V_LN1G, V_LN2G, V_LN3G, V_LN4G, V_BNG),
                       jax.random.split(ks[2], 5)):
        V = V.at[idx].set(1.0 + 0.02 * jax.random.normal(kk, (D,), jnp.float32))
    # batch-norm running variance must be positive
    V = V.at[V_BNV].set(0.5 + jnp.abs(jax.random.normal(ks[3], (D,), jnp.float32)))
    DW = 0.1 * jax.random.normal(ks[4], (K, D), jnp.float32)
    return W, V, DW


if __name__ == "__main__":
    key = jax.random.PRNGKey(0)
    kx, kp = jax.random.split(key)

    B, T = 2, 8
    x = jax.random.normal(kx, (B, T, D), jnp.float32)
    # second sequence has its last two frames padded
    mask = jnp.array([[1.0] * T,
                      [1.0] * (T - 2) + [0.0] * 2], jnp.float32).reshape(B, 1, T)

    W, V, DW = make_params(kp)
    out, out_mask = squeezeformer_layer(x, mask, W, V, DW)
    jax.block_until_ready(out)

    assert out.shape == (B, T, D)
    assert bool(jnp.all(jnp.isfinite(out)))
    assert out_mask.shape == (B, 1, T)
    print("KERNEL_OK")
</pallas_src>

<mosaic_0001>
module attributes {stable_mosaic.version = 11 : i64} {
  func.func @squeezeformer_kernel(%arg0: i32, %arg1: memref<2x8x32xf32, #tpu.memory_space<vmem>>, %arg2: memref<2x1x8xf32, #tpu.memory_space<vmem>>, %arg3: memref<2x8x1xf32, #tpu.memory_space<vmem>>, %arg4: memref<32x96xbf16, #tpu.memory_space<vmem>>, %arg5: memref<1x96xf32, #tpu.memory_space<vmem>>, %arg6: memref<32x64xbf16, #tpu.memory_space<vmem>>, %arg7: memref<1x64xf32, #tpu.memory_space<vmem>>, %arg8: memref<6x32x32xbf16, #tpu.memory_space<vmem>>, %arg9: memref<15x32xf32, #tpu.memory_space<vmem>>, %arg10: memref<3x32xf32, #tpu.memory_space<vmem>>, %arg11: memref<2x8x32xf32, #tpu.memory_space<vmem>>) attributes {dimension_semantics = [#tpu.dimension_semantics<parallel>], iteration_bounds = array<i64: 1>, scalar_prefetch = 0 : i64, scratch_operands = 0 : i64, tpu.core_type = #tpu.core_type<tc>, window_params = [{transform_indices = @transform_0, window_bounds = array<i64: 2, 8, 32>}, {transform_indices = @transform_1, window_bounds = array<i64: 2, 1, 8>}, {transform_indices = @transform_2, window_bounds = array<i64: 2, 8, 1>}, {pipeline_mode = #tpu.pipeline_mode<synchronous>, transform_indices = @transform_3, window_bounds = array<i64: 32, 96>}, {pipeline_mode = #tpu.pipeline_mode<synchronous>, transform_indices = @transform_4, window_bounds = array<i64: 1, 96>}, {pipeline_mode = #tpu.pipeline_mode<synchronous>, transform_indices = @transform_5, window_bounds = array<i64: 32, 64>}, {pipeline_mode = #tpu.pipeline_mode<synchronous>, transform_indices = @transform_6, window_bounds = array<i64: 1, 64>}, {pipeline_mode = #tpu.pipeline_mode<synchronous>, transform_indices = @transform_7, window_bounds = array<i64: 6, 32, 32>}, {pipeline_mode = #tpu.pipeline_mode<synchronous>, transform_indices = @transform_8, window_bounds = array<i64: 15, 32>}, {pipeline_mode = #tpu.pipeline_mode<synchronous>, transform_indices = @transform_9, window_bounds = array<i64: 3, 32>}, {transform_indices = @transform_10, window_bounds = array<i64: 2, 8, 32>}]} {
    %c0 = arith.constant 0 : index
    %c0_0 = arith.constant 0 : index
    %0 = vector.load %arg4[%c0, %c0_0] : memref<32x96xbf16, #tpu.memory_space<vmem>>, vector<32x96xbf16>
    %c0_1 = arith.constant 0 : index
    %c0_2 = arith.constant 0 : index
    %1 = vector.load %arg5[%c0_1, %c0_2] : memref<1x96xf32, #tpu.memory_space<vmem>>, vector<1x96xf32>
    %c0_3 = arith.constant 0 : index
    %c0_4 = arith.constant 0 : index
    %2 = vector.load %arg6[%c0_3, %c0_4] : memref<32x64xbf16, #tpu.memory_space<vmem>>, vector<32x64xbf16>
    %c0_5 = arith.constant 0 : index
    %c0_6 = arith.constant 0 : index
    %3 = vector.load %arg7[%c0_5, %c0_6] : memref<1x64xf32, #tpu.memory_space<vmem>>, vector<1x64xf32>
    %c0_7 = arith.constant 0 : index
    %c0_8 = arith.constant 0 : index
    %c0_9 = arith.constant 0 : index
    %4 = vector.load %arg8[%c0_7, %c0_8, %c0_9] : memref<6x32x32xbf16, #tpu.memory_space<vmem>>, vector<1x32x32xbf16>
    %5 = vector.shape_cast %4 : vector<1x32x32xbf16> to vector<32x32xbf16>
    %c1 = arith.constant 1 : index
    %c0_10 = arith.constant 0 : index
    %c0_11 = arith.constant 0 : index
    %6 = vector.load %arg8[%c1, %c0_10, %c0_11] : memref<6x32x32xbf16, #tpu.memory_space<vmem>>, vector<1x32x32xbf16>
    %7 = vector.shape_cast %6 : vector<1x32x32xbf16> to vector<32x32xbf16>
    %c2 = arith.constant 2 : index
    %c0_12 = arith.constant 0 : index
    %c0_13 = arith.constant 0 : index
    %8 = vector.load %arg8[%c2, %c0_12, %c0_13] : memref<6x32x32xbf16, #tpu.memory_space<vmem>>, vector<1x32x32xbf16>
    %9 = vector.shape_cast %8 : vector<1x32x32xbf16> to vector<32x32xbf16>
    %c3 = arith.constant 3 : index
    %c0_14 = arith.constant 0 : index
    %c0_15 = arith.constant 0 : index
    %10 = vector.load %arg8[%c3, %c0_14, %c0_15] : memref<6x32x32xbf16, #tpu.memory_space<vmem>>, vector<1x32x32xbf16>
    %11 = vector.shape_cast %10 : vector<1x32x32xbf16> to vector<32x32xbf16>
    %c4 = arith.constant 4 : index
    %c0_16 = arith.constant 0 : index
    %c0_17 = arith.constant 0 : index
    %12 = vector.load %arg8[%c4, %c0_16, %c0_17] : memref<6x32x32xbf16, #tpu.memory_space<vmem>>, vector<1x32x32xbf16>
    %13 = vector.shape_cast %12 : vector<1x32x32xbf16> to vector<32x32xbf16>
    %c5 = arith.constant 5 : index
    %c0_18 = arith.constant 0 : index
    %c0_19 = arith.constant 0 : index
    %14 = vector.load %arg8[%c5, %c0_18, %c0_19] : memref<6x32x32xbf16, #tpu.memory_space<vmem>>, vector<1x32x32xbf16>
    %15 = vector.shape_cast %14 : vector<1x32x32xbf16> to vector<32x32xbf16>
    %c0_20 = arith.constant 0 : index
    %c0_21 = arith.constant 0 : index
    %16 = vector.load %arg10[%c0_20, %c0_21] : memref<3x32xf32, #tpu.memory_space<vmem>>, vector<3x32xf32>
    %c0_22 = arith.constant 0 : index
    %c0_23 = arith.constant 0 : index
    %17 = vector.load %arg9[%c0_22, %c0_23] : memref<15x32xf32, #tpu.memory_space<vmem>>, vector<15x32xf32>
    %18 = vector.extract_strided_slice %17 {offsets = [0, 0], sizes = [1, 32], strides = [1, 1]} : vector<15x32xf32> to vector<1x32xf32>
    %19 = vector.extract_strided_slice %17 {offsets = [1, 0], sizes = [1, 32], strides = [1, 1]} : vector<15x32xf32> to vector<1x32xf32>
    %20 = vector.extract_strided_slice %17 {offsets = [2, 0], sizes = [1, 32], strides = [1, 1]} : vector<15x32xf32> to vector<1x32xf32>
    %21 = vector.extract_strided_slice %17 {offsets = [3, 0], sizes = [1, 32], strides = [1, 1]} : vector<15x32xf32> to vector<1x32xf32>
    %22 = vector.extract_strided_slice %17 {offsets = [4, 0], sizes = [1, 32], strides = [1, 1]} : vector<15x32xf32> to vector<1x32xf32>
    %23 = vector.extract_strided_slice %17 {offsets = [5, 0], sizes = [1, 32], strides = [1, 1]} : vector<15x32xf32> to vector<1x32xf32>
    %24 = vector.extract_strided_slice %17 {offsets = [6, 0], sizes = [1, 32], strides = [1, 1]} : vector<15x32xf32> to vector<1x32xf32>
    %25 = vector.extract_strided_slice %17 {offsets = [7, 0], sizes = [1, 32], strides = [1, 1]} : vector<15x32xf32> to vector<1x32xf32>
    %26 = vector.extract_strided_slice %17 {offsets = [8, 0], sizes = [1, 32], strides = [1, 1]} : vector<15x32xf32> to vector<1x32xf32>
    %27 = vector.extract_strided_slice %17 {offsets = [9, 0], sizes = [1, 32], strides = [1, 1]} : vector<15x32xf32> to vector<1x32xf32>
    %28 = vector.extract_strided_slice %17 {offsets = [10, 0], sizes = [1, 32], strides = [1, 1]} : vector<15x32xf32> to vector<1x32xf32>
    %29 = vector.extract_strided_slice %17 {offsets = [11, 0], sizes = [1, 32], strides = [1, 1]} : vector<15x32xf32> to vector<1x32xf32>
    %30 = vector.extract_strided_slice %17 {offsets = [12, 0], sizes = [1, 32], strides = [1, 1]} : vector<15x32xf32> to vector<1x32xf32>
    %31 = vector.extract_strided_slice %17 {offsets = [13, 0], sizes = [1, 32], strides = [1, 1]} : vector<15x32xf32> to vector<1x32xf32>
    %32 = vector.extract_strided_slice %17 {offsets = [14, 0], sizes = [1, 32], strides = [1, 1]} : vector<15x32xf32> to vector<1x32xf32>
    %c0_24 = arith.constant 0 : index
    %c0_25 = arith.constant 0 : index
    %c0_26 = arith.constant 0 : index
    %33 = vector.load %arg1[%c0_24, %c0_25, %c0_26] : memref<2x8x32xf32, #tpu.memory_space<vmem>>, vector<2x8x32xf32>
    %34 = vector.shape_cast %33 : vector<2x8x32xf32> to vector<16x32xf32>
    %c0_27 = arith.constant 0 : index
    %c0_28 = arith.constant 0 : index
    %c0_29 = arith.constant 0 : index
    %35 = vector.load %arg2[%c0_27, %c0_28, %c0_29] : memref<2x1x8xf32, #tpu.memory_space<vmem>>, vector<2x1x8xf32>
    %cst = arith.constant 1.000000e+00 : f32
    %36 = vector.broadcast %cst : f32 to vector<2x1x8xf32>
    %37 = arith.subf %35, %36 : vector<2x1x8xf32>
    %cst_30 = arith.constant 1.000000e+30 : f32
    %38 = vector.broadcast %cst_30 : f32 to vector<2x1x8xf32>
    %39 = arith.mulf %37, %38 : vector<2x1x8xf32>
    %c0_31 = arith.constant 0 : index
    %c0_32 = arith.constant 0 : index
    %c0_33 = arith.constant 0 : index
    %40 = vector.load %arg3[%c0_31, %c0_32, %c0_33] : memref<2x8x1xf32, #tpu.memory_space<vmem>>, vector<2x8x1xf32>
    %41 = vector.shape_cast %40 : vector<2x8x1xf32> to vector<16x1xf32>
    %42 = arith.truncf %34 : vector<16x32xf32> to vector<16x32xbf16>
    %cst_34 = arith.constant dense<0.000000e+00> : vector<16x96xf32>
    %43 = tpu.matmul %42, %0, %cst_34 {dimension_numbers = #tpu.dot_dimension_numbers<[1], [0], [0], [1], [0, 0, 1, 1], [], []>} : vector<16x32xbf16>, vector<32x96xbf16>, vector<16x96xf32> -> vector<16x96xf32>
    %44 = vector.broadcast %1 : vector<1x96xf32> to vector<16x96xf32>
    %45 = arith.addf %43, %44 : vector<16x96xf32>
    %46 = vector.extract_strided_slice %45 {offsets = [0, 0], sizes = [16, 32], strides = [1, 1]} : vector<16x96xf32> to vector<16x32xf32>
    %47 = vector.shape_cast %46 : vector<16x32xf32> to vector<2x8x32xf32>
    %48 = arith.truncf %47 : vector<2x8x32xf32> to vector<2x8x32xbf16>
    %49 = vector.extract_strided_slice %45 {offsets = [0, 32], sizes = [16, 32], strides = [1, 1]} : vector<16x96xf32> to vector<16x32xf32>
    %50 = vector.shape_cast %49 : vector<16x32xf32> to vector<2x8x32xf32>
    %51 = arith.truncf %50 : vector<2x8x32xf32> to vector<2x8x32xbf16>
    %52 = vector.extract_strided_slice %45 {offsets = [0, 64], sizes = [16, 32], strides = [1, 1]} : vector<16x96xf32> to vector<16x32xf32>
    %53 = vector.shape_cast %52 : vector<16x32xf32> to vector<2x8x32xf32>
    %54 = arith.truncf %53 : vector<2x8x32xf32> to vector<2x8x32xbf16>
    %55 = tpu.iota {dimensions = array<i32: 2>} : vector<1x1x32xi32>
    %cst_35 = arith.constant 0.000000e+00 : f32
    %56 = vector.broadcast %cst_35 : f32 to vector<2x8x32xf32>
    %c0_i32 = arith.constant 0 : i32
    %57 = vector.broadcast %c0_i32 : i32 to vector<1x1x32xi32>
    %58 = arith.cmpi sge, %55, %57 : vector<1x1x32xi32>
    %c8_i32 = arith.constant 8 : i32
    %59 = vector.broadcast %c8_i32 : i32 to vector<1x1x32xi32>
    %60 = arith.cmpi slt, %55, %59 : vector<1x1x32xi32>
    %61 = arith.andi %58, %60 : vector<1x1x32xi1>
    %62 = arith.extui %61 : vector<1x1x32xi1> to vector<1x1x32xi32>
    %63 = arith.sitofp %62 : vector<1x1x32xi32> to vector<1x1x32xf32>
    %64 = arith.truncf %63 : vector<1x1x32xf32> to vector<1x1x32xbf16>
    %65 = vector.broadcast %64 : vector<1x1x32xbf16> to vector<2x8x32xbf16>
    %66 = arith.mulf %48, %65 : vector<2x8x32xbf16>
    "tpu.trace_start"() <{level = 10 : i32, message = "bqd,bkd->bqk"}> : () -> ()
    %cst_36 = arith.constant dense<0.000000e+00> : vector<2x8x8xf32>
    %67 = tpu.matmul %66, %51, %cst_36 {dimension_numbers = #tpu.dot_dimension_numbers<[2], [2], [1], [1], [0, 0, 0, 1, 1, 1], [0], [0]>} : vector<2x8x32xbf16>, vector<2x8x32xbf16>, vector<2x8x8xf32> -> vector<2x8x8xf32>
    "tpu.trace_stop"() : () -> ()
    %68 = vector.broadcast %39 : vector<2x1x8xf32> to vector<2x8x8xf32>
    %69 = arith.addf %67, %68 : vector<2x8x8xf32>
    %cst_37 = arith.constant dense<0xFF800000> : vector<2x8xf32>
    %70 = vector.multi_reduction <maximumf>, %69, %cst_37 [2] : vector<2x8x8xf32> to vector<2x8xf32>
    %71 = vector.shape_cast %70 : vector<2x8xf32> to vector<2x8x1xf32>
    %72 = vector.broadcast %71 : vector<2x8x1xf32> to vector<2x8x8xf32>
    %73 = arith.subf %69, %72 : vector<2x8x8xf32>
    %74 = math.exp %73 : vector<2x8x8xf32>
    %cst_38 = arith.constant dense<0.000000e+00> : vector<2x8xf32>
    %75 = vector.multi_reduction <add>, %74, %cst_38 [2] : vector<2x8x8xf32> to vector<2x8xf32>
    %76 = vector.shape_cast %75 : vector<2x8xf32> to vector<2x8x1xf32>
    %77 = tpu.reciprocal %76 {approx = true} : vector<2x8x1xf32> -> vector<2x8x1xf32>
    %78 = vector.broadcast %77 : vector<2x8x1xf32> to vector<2x8x8xf32>
    %79 = arith.mulf %74, %78 : vector<2x8x8xf32>
    %80 = vector.broadcast %35 : vector<2x1x8xf32> to vector<2x8x8xf32>
    %81 = arith.mulf %79, %80 : vector<2x8x8xf32>
    %82 = arith.truncf %81 : vector<2x8x8xf32> to vector<2x8x8xbf16>
    %83 = vector.broadcast %64 : vector<1x1x32xbf16> to vector<2x8x32xbf16>
    %84 = arith.mulf %54, %83 : vector<2x8x32xbf16>
    "tpu.trace_start"() <{level = 10 : i32, message = "bqk,bkd->bqd"}> : () -> ()
    %cst_39 = arith.constant dense<0.000000e+00> : vector<2x8x32xf32>
    %85 = tpu.matmul %82, %84, %cst_39 {dimension_numbers = #tpu.dot_dimension_numbers<[2], [1], [1], [2], [0, 0, 0, 1, 1, 2], [0], [0]>} : vector<2x8x8xbf16>, vector<2x8x32xbf16>, vector<2x8x32xf32> -> vector<2x8x32xf32>
    "tpu.trace_stop"() : () -> ()
    %86 = arith.addf %56, %85 : vector<2x8x32xf32>
    %c8_i32_40 = arith.constant 8 : i32
    %87 = vector.broadcast %c8_i32_40 : i32 to vector<1x1x32xi32>
    %88 = arith.cmpi sge, %55, %87 : vector<1x1x32xi32>
    %c16_i32 = arith.constant 16 : i32
    %89 = vector.broadcast %c16_i32 : i32 to vector<1x1x32xi32>
    %90 = arith.cmpi slt, %55, %89 : vector<1x1x32xi32>
    %91 = arith.andi %88, %90 : vector<1x1x32xi1>
    %92 = arith.extui %91 : vector<1x1x32xi1> to vector<1x1x32xi32>
    %93 = arith.sitofp %92 : vector<1x1x32xi32> to vector<1x1x32xf32>
    %94 = arith.truncf %93 : vector<1x1x32xf32> to vector<1x1x32xbf16>
    %95 = vector.broadcast %94 : vector<1x1x32xbf16> to vector<2x8x32xbf16>
    %96 = arith.mulf %48, %95 : vector<2x8x32xbf16>
    "tpu.trace_start"() <{level = 10 : i32, message = "bqd,bkd->bqk"}> : () -> ()
    %cst_41 = arith.constant dense<0.000000e+00> : vector<2x8x8xf32>
    %97 = tpu.matmul %96, %51, %cst_41 {dimension_numbers = #tpu.dot_dimension_numbers<[2], [2], [1], [1], [0, 0, 0, 1, 1, 1], [0], [0]>} : vector<2x8x32xbf16>, vector<2x8x32xbf16>, vector<2x8x8xf32> -> vector<2x8x8xf32>
    "tpu.trace_stop"() : () -> ()
    %98 = vector.broadcast %39 : vector<2x1x8xf32> to vector<2x8x8xf32>
    %99 = arith.addf %97, %98 : vector<2x8x8xf32>
    %cst_42 = arith.constant dense<0xFF800000> : vector<2x8xf32>
    %100 = vector.multi_reduction <maximumf>, %99, %cst_42 [2] : vector<2x8x8xf32> to vector<2x8xf32>
    %101 = vector.shape_cast %100 : vector<2x8xf32> to vector<2x8x1xf32>
    %102 = vector.broadcast %101 : vector<2x8x1xf32> to vector<2x8x8xf32>
    %103 = arith.subf %99, %102 : vector<2x8x8xf32>
    %104 = math.exp %103 : vector<2x8x8xf32>
    %cst_43 = arith.constant dense<0.000000e+00> : vector<2x8xf32>
    %105 = vector.multi_reduction <add>, %104, %cst_43 [2] : vector<2x8x8xf32> to vector<2x8xf32>
    %106 = vector.shape_cast %105 : vector<2x8xf32> to vector<2x8x1xf32>
    %107 = tpu.reciprocal %106 {approx = true} : vector<2x8x1xf32> -> vector<2x8x1xf32>
    %108 = vector.broadcast %107 : vector<2x8x1xf32> to vector<2x8x8xf32>
    %109 = arith.mulf %104, %108 : vector<2x8x8xf32>
    %110 = vector.broadcast %35 : vector<2x1x8xf32> to vector<2x8x8xf32>
    %111 = arith.mulf %109, %110 : vector<2x8x8xf32>
    %112 = arith.truncf %111 : vector<2x8x8xf32> to vector<2x8x8xbf16>
    %113 = vector.broadcast %94 : vector<1x1x32xbf16> to vector<2x8x32xbf16>
    %114 = arith.mulf %54, %113 : vector<2x8x32xbf16>
    "tpu.trace_start"() <{level = 10 : i32, message = "bqk,bkd->bqd"}> : () -> ()
    %cst_44 = arith.constant dense<0.000000e+00> : vector<2x8x32xf32>
    %115 = tpu.matmul %112, %114, %cst_44 {dimension_numbers = #tpu.dot_dimension_numbers<[2], [1], [1], [2], [0, 0, 0, 1, 1, 2], [0], [0]>} : vector<2x8x8xbf16>, vector<2x8x32xbf16>, vector<2x8x32xf32> -> vector<2x8x32xf32>
    "tpu.trace_stop"() : () -> ()
    %116 = arith.addf %86, %115 : vector<2x8x32xf32>
    %c16_i32_45 = arith.constant 16 : i32
    %117 = vector.broadcast %c16_i32_45 : i32 to vector<1x1x32xi32>
    %118 = arith.cmpi sge, %55, %117 : vector<1x1x32xi32>
    %c24_i32 = arith.constant 24 : i32
    %119 = vector.broadcast %c24_i32 : i32 to vector<1x1x32xi32>
    %120 = arith.cmpi slt, %55, %119 : vector<1x1x32xi32>
    %121 = arith.andi %118, %120 : vector<1x1x32xi1>
    %122 = arith.extui %121 : vector<1x1x32xi1> to vector<1x1x32xi32>
    %123 = arith.sitofp %122 : vector<1x1x32xi32> to vector<1x1x32xf32>
    %124 = arith.truncf %123 : vector<1x1x32xf32> to vector<1x1x32xbf16>
    %125 = vector.broadcast %124 : vector<1x1x32xbf16> to vector<2x8x32xbf16>
    %126 = arith.mulf %48, %125 : vector<2x8x32xbf16>
    "tpu.trace_start"() <{level = 10 : i32, message = "bqd,bkd->bqk"}> : () -> ()
    %cst_46 = arith.constant dense<0.000000e+00> : vector<2x8x8xf32>
    %127 = tpu.matmul %126, %51, %cst_46 {dimension_numbers = #tpu.dot_dimension_numbers<[2], [2], [1], [1], [0, 0, 0, 1, 1, 1], [0], [0]>} : vector<2x8x32xbf16>, vector<2x8x32xbf16>, vector<2x8x8xf32> -> vector<2x8x8xf32>
    "tpu.trace_stop"() : () -> ()
    %128 = vector.broadcast %39 : vector<2x1x8xf32> to vector<2x8x8xf32>
    %129 = arith.addf %127, %128 : vector<2x8x8xf32>
    %cst_47 = arith.constant dense<0xFF800000> : vector<2x8xf32>
    %130 = vector.multi_reduction <maximumf>, %129, %cst_47 [2] : vector<2x8x8xf32> to vector<2x8xf32>
    %131 = vector.shape_cast %130 : vector<2x8xf32> to vector<2x8x1xf32>
    %132 = vector.broadcast %131 : vector<2x8x1xf32> to vector<2x8x8xf32>
    %133 = arith.subf %129, %132 : vector<2x8x8xf32>
    %134 = math.exp %133 : vector<2x8x8xf32>
    %cst_48 = arith.constant dense<0.000000e+00> : vector<2x8xf32>
    %135 = vector.multi_reduction <add>, %134, %cst_48 [2] : vector<2x8x8xf32> to vector<2x8xf32>
    %136 = vector.shape_cast %135 : vector<2x8xf32> to vector<2x8x1xf32>
    %137 = tpu.reciprocal %136 {approx = true} : vector<2x8x1xf32> -> vector<2x8x1xf32>
    %138 = vector.broadcast %137 : vector<2x8x1xf32> to vector<2x8x8xf32>
    %139 = arith.mulf %134, %138 : vector<2x8x8xf32>
    %140 = vector.broadcast %35 : vector<2x1x8xf32> to vector<2x8x8xf32>
    %141 = arith.mulf %139, %140 : vector<2x8x8xf32>
    %142 = arith.truncf %141 : vector<2x8x8xf32> to vector<2x8x8xbf16>
    %143 = vector.broadcast %124 : vector<1x1x32xbf16> to vector<2x8x32xbf16>
    %144 = arith.mulf %54, %143 : vector<2x8x32xbf16>
    "tpu.trace_start"() <{level = 10 : i32, message = "bqk,bkd->bqd"}> : () -> ()
    %cst_49 = arith.constant dense<0.000000e+00> : vector<2x8x32xf32>
    %145 = tpu.matmul %142, %144, %cst_49 {dimension_numbers = #tpu.dot_dimension_numbers<[2], [1], [1], [2], [0, 0, 0, 1, 1, 2], [0], [0]>} : vector<2x8x8xbf16>, vector<2x8x32xbf16>, vector<2x8x32xf32> -> vector<2x8x32xf32>
    "tpu.trace_stop"() : () -> ()
    %146 = arith.addf %116, %145 : vector<2x8x32xf32>
    %c24_i32_50 = arith.constant 24 : i32
    %147 = vector.broadcast %c24_i32_50 : i32 to vector<1x1x32xi32>
    %148 = arith.cmpi sge, %55, %147 : vector<1x1x32xi32>
    %c32_i32 = arith.constant 32 : i32
    %149 = vector.broadcast %c32_i32 : i32 to vector<1x1x32xi32>
    %150 = arith.cmpi slt, %55, %149 : vector<1x1x32xi32>
    %151 = arith.andi %148, %150 : vector<1x1x32xi1>
    %152 = arith.extui %151 : vector<1x1x32xi1> to vector<1x1x32xi32>
    %153 = arith.sitofp %152 : vector<1x1x32xi32> to vector<1x1x32xf32>
    %154 = arith.truncf %153 : vector<1x1x32xf32> to vector<1x1x32xbf16>
    %155 = vector.broadcast %154 : vector<1x1x32xbf16> to vector<2x8x32xbf16>
    %156 = arith.mulf %48, %155 : vector<2x8x32xbf16>
    "tpu.trace_start"() <{level = 10 : i32, message = "bqd,bkd->bqk"}> : () -> ()
    %cst_51 = arith.constant dense<0.000000e+00> : vector<2x8x8xf32>
    %157 = tpu.matmul %156, %51, %cst_51 {dimension_numbers = #tpu.dot_dimension_numbers<[2], [2], [1], [1], [0, 0, 0, 1, 1, 1], [0], [0]>} : vector<2x8x32xbf16>, vector<2x8x32xbf16>, vector<2x8x8xf32> -> vector<2x8x8xf32>
    "tpu.trace_stop"() : () -> ()
    %158 = vector.broadcast %39 : vector<2x1x8xf32> to vector<2x8x8xf32>
    %159 = arith.addf %157, %158 : vector<2x8x8xf32>
    %cst_52 = arith.constant dense<0xFF800000> : vector<2x8xf32>
    %160 = vector.multi_reduction <maximumf>, %159, %cst_52 [2] : vector<2x8x8xf32> to vector<2x8xf32>
    %161 = vector.shape_cast %160 : vector<2x8xf32> to vector<2x8x1xf32>
    %162 = vector.broadcast %161 : vector<2x8x1xf32> to vector<2x8x8xf32>
    %163 = arith.subf %159, %162 : vector<2x8x8xf32>
    %164 = math.exp %163 : vector<2x8x8xf32>
    %cst_53 = arith.constant dense<0.000000e+00> : vector<2x8xf32>
    %165 = vector.multi_reduction <add>, %164, %cst_53 [2] : vector<2x8x8xf32> to vector<2x8xf32>
    %166 = vector.shape_cast %165 : vector<2x8xf32> to vector<2x8x1xf32>
    %167 = tpu.reciprocal %166 {approx = true} : vector<2x8x1xf32> -> vector<2x8x1xf32>
    %168 = vector.broadcast %167 : vector<2x8x1xf32> to vector<2x8x8xf32>
    %169 = arith.mulf %164, %168 : vector<2x8x8xf32>
    %170 = vector.broadcast %35 : vector<2x1x8xf32> to vector<2x8x8xf32>
    %171 = arith.mulf %169, %170 : vector<2x8x8xf32>
    %172 = arith.truncf %171 : vector<2x8x8xf32> to vector<2x8x8xbf16>
    %173 = vector.broadcast %154 : vector<1x1x32xbf16> to vector<2x8x32xbf16>
    %174 = arith.mulf %54, %173 : vector<2x8x32xbf16>
    "tpu.trace_start"() <{level = 10 : i32, message = "bqk,bkd->bqd"}> : () -> ()
    %cst_54 = arith.constant dense<0.000000e+00> : vector<2x8x32xf32>
    %175 = tpu.matmul %172, %174, %cst_54 {dimension_numbers = #tpu.dot_dimension_numbers<[2], [1], [1], [2], [0, 0, 0, 1, 1, 2], [0], [0]>} : vector<2x8x8xbf16>, vector<2x8x32xbf16>, vector<2x8x32xf32> -> vector<2x8x32xf32>
    "tpu.trace_stop"() : () -> ()
    %176 = arith.addf %146, %175 : vector<2x8x32xf32>
    %177 = vector.shape_cast %176 : vector<2x8x32xf32> to vector<16x32xf32>
    %178 = arith.truncf %177 : vector<16x32xf32> to vector<16x32xbf16>
    %cst_55 = arith.constant dense<0.000000e+00> : vector<16x32xf32>
    %179 = tpu.matmul %178, %5, %cst_55 {dimension_numbers = #tpu.dot_dimension_numbers<[1], [0], [0], [1], [0, 0, 1, 1], [], []>} : vector<16x32xbf16>, vector<32x32xbf16>, vector<16x32xf32> -> vector<16x32xf32>
    %180 = vector.broadcast %18 : vector<1x32xf32> to vector<16x32xf32>
    %181 = arith.addf %179, %180 : vector<16x32xf32>
    %182 = arith.addf %34, %181 : vector<16x32xf32>
    %cst_56 = arith.constant dense<0.000000e+00> : vector<16xf32>
    %183 = vector.multi_reduction <add>, %182, %cst_56 [1] : vector<16x32xf32> to vector<16xf32>
    %184 = vector.shape_cast %183 : vector<16xf32> to vector<16x1xf32>
    %cst_57 = arith.constant 3.200000e+01 : f32
    %185 = vector.broadcast %cst_57 : f32 to vector<16x1xf32>
    %186 = arith.divf %184, %185 : vector<16x1xf32>
    %187 = vector.broadcast %186 : vector<16x1xf32> to vector<16x32xf32>
    %188 = arith.subf %182, %187 : vector<16x32xf32>
    %189 = arith.mulf %188, %188 : vector<16x32xf32>
    %cst_58 = arith.constant dense<0.000000e+00> : vector<16xf32>
    %190 = vector.multi_reduction <add>, %189, %cst_58 [1] : vector<16x32xf32> to vector<16xf32>
    %191 = vector.shape_cast %190 : vector<16xf32> to vector<16x1xf32>
    %cst_59 = arith.constant 3.200000e+01 : f32
    %192 = vector.broadcast %cst_59 : f32 to vector<16x1xf32>
    %193 = arith.divf %191, %192 : vector<16x1xf32>
    %194 = vector.broadcast %186 : vector<16x1xf32> to vector<16x32xf32>
    %195 = arith.subf %182, %194 : vector<16x32xf32>
    %cst_60 = arith.constant 9.99999974E-6 : f32
    %196 = vector.broadcast %cst_60 : f32 to vector<16x1xf32>
    %197 = arith.addf %193, %196 : vector<16x1xf32>
    %198 = math.rsqrt %197 : vector<16x1xf32>
    %199 = vector.broadcast %198 : vector<16x1xf32> to vector<16x32xf32>
    %200 = arith.mulf %195, %199 : vector<16x32xf32>
    %201 = vector.broadcast %19 : vector<1x32xf32> to vector<16x32xf32>
    %202 = arith.mulf %200, %201 : vector<16x32xf32>
    %203 = vector.broadcast %20 : vector<1x32xf32> to vector<16x32xf32>
    %204 = arith.addf %202, %203 : vector<16x32xf32>
    %205 = arith.truncf %204 : vector<16x32xf32> to vector<16x32xbf16>
    %cst_61 = arith.constant dense<0.000000e+00> : vector<16x32xf32>
    %206 = tpu.matmul %205, %7, %cst_61 {dimension_numbers = #tpu.dot_dimension_numbers<[1], [0], [0], [1], [0, 0, 1, 1], [], []>} : vector<16x32xbf16>, vector<32x32xbf16>, vector<16x32xf32> -> vector<16x32xf32>
    %207 = vector.broadcast %27 : vector<1x32xf32> to vector<16x32xf32>
    %208 = arith.addf %206, %207 : vector<16x32xf32>
    %cst_62 = arith.constant 0.000000e+00 : f32
    %209 = vector.broadcast %cst_62 : f32 to vector<16x32xf32>
    %210 = arith.maximumf %208, %209 : vector<16x32xf32>
    %211 = arith.truncf %210 : vector<16x32xf32> to vector<16x32xbf16>
    %cst_63 = arith.constant dense<0.000000e+00> : vector<16x32xf32>
    %212 = tpu.matmul %211, %9, %cst_63 {dimension_numbers = #tpu.dot_dimension_numbers<[1], [0], [0], [1], [0, 0, 1, 1], [], []>} : vector<16x32xbf16>, vector<32x32xbf16>, vector<16x32xf32> -> vector<16x32xf32>
    %213 = arith.addf %204, %212 : vector<16x32xf32>
    %214 = vector.broadcast %28 : vector<1x32xf32> to vector<16x32xf32>
    %215 = arith.addf %213, %214 : vector<16x32xf32>
    %cst_64 = arith.constant dense<0.000000e+00> : vector<16xf32>
    %216 = vector.multi_reduction <add>, %215, %cst_64 [1] : vector<16x32xf32> to vector<16xf32>
    %217 = vector.shape_cast %216 : vector<16xf32> to vector<16x1xf32>
    %cst_65 = arith.constant 3.200000e+01 : f32
    %218 = vector.broadcast %cst_65 : f32 to vector<16x1xf32>
    %219 = arith.divf %217, %218 : vector<16x1xf32>
    %220 = vector.broadcast %219 : vector<16x1xf32> to vector<16x32xf32>
    %221 = arith.subf %215, %220 : vector<16x32xf32>
    %222 = arith.mulf %221, %221 : vector<16x32xf32>
    %cst_66 = arith.constant dense<0.000000e+00> : vector<16xf32>
    %223 = vector.multi_reduction <add>, %222, %cst_66 [1] : vector<16x32xf32> to vector<16xf32>
    %224 = vector.shape_cast %223 : vector<16xf32> to vector<16x1xf32>
    %cst_67 = arith.constant 3.200000e+01 : f32
    %225 = vector.broadcast %cst_67 : f32 to vector<16x1xf32>
    %226 = arith.divf %224, %225 : vector<16x1xf32>
    %227 = vector.broadcast %219 : vector<16x1xf32> to vector<16x32xf32>
    %228 = arith.subf %215, %227 : vector<16x32xf32>
    %cst_68 = arith.constant 9.99999974E-6 : f32
    %229 = vector.broadcast %cst_68 : f32 to vector<16x1xf32>
    %230 = arith.addf %226, %229 : vector<16x1xf32>
    %231 = math.rsqrt %230 : vector<16x1xf32>
    %232 = vector.broadcast %231 : vector<16x1xf32> to vector<16x32xf32>
    %233 = arith.mulf %228, %232 : vector<16x32xf32>
    %234 = vector.broadcast %21 : vector<1x32xf32> to vector<16x32xf32>
    %235 = arith.mulf %233, %234 : vector<16x32xf32>
    %236 = vector.broadcast %22 : vector<1x32xf32> to vector<16x32xf32>
    %237 = arith.addf %235, %236 : vector<16x32xf32>
    %238 = vector.broadcast %41 : vector<16x1xf32> to vector<16x32xf32>
    %239 = arith.mulf %237, %238 : vector<16x32xf32>
    %240 = arith.truncf %239 : vector<16x32xf32> to vector<16x32xbf16>
    %cst_69 = arith.constant dense<0.000000e+00> : vector<16x64xf32>
    %241 = tpu.matmul %240, %2, %cst_69 {dimension_numbers = #tpu.dot_dimension_numbers<[1], [0], [0], [1], [0, 0, 1, 1], [], []>} : vector<16x32xbf16>, vector<32x64xbf16>, vector<16x64xf32> -> vector<16x64xf32>
    %242 = vector.broadcast %3 : vector<1x64xf32> to vector<16x64xf32>
    %243 = arith.addf %241, %242 : vector<16x64xf32>
    %244 = vector.extract_strided_slice %243 {offsets = [0, 0], sizes = [16, 32], strides = [1, 1]} : vector<16x64xf32> to vector<16x32xf32>
    %245 = vector.extract_strided_slice %243 {offsets = [0, 32], sizes = [16, 32], strides = [1, 1]} : vector<16x64xf32> to vector<16x32xf32>
    %cst_70 = arith.constant 5.000000e-01 : f32
    %246 = vector.broadcast %cst_70 : f32 to vector<16x32xf32>
    %247 = arith.mulf %246, %245 : vector<16x32xf32>
    %248 = math.tanh %247 : vector<16x32xf32>
    %cst_71 = arith.constant 5.000000e-01 : f32
    %249 = vector.broadcast %cst_71 : f32 to vector<16x32xf32>
    %250 = arith.mulf %249, %248 : vector<16x32xf32>
    %cst_72 = arith.constant 5.000000e-01 : f32
    %251 = vector.broadcast %cst_72 : f32 to vector<16x32xf32>
    %252 = arith.addf %250, %251 : vector<16x32xf32>
    %253 = arith.mulf %244, %252 : vector<16x32xf32>
    %254 = tpu.iota {dimensions = array<i32: 1>} : vector<2x8x1xi32>
    %255 = vector.shape_cast %254 : vector<2x8x1xi32> to vector<16x1xi32>
    %256 = vector.extract_strided_slice %16 {offsets = [1, 0], sizes = [1, 32], strides = [1, 1]} : vector<3x32xf32> to vector<1x32xf32>
    %257 = vector.broadcast %256 : vector<1x32xf32> to vector<16x32xf32>
    %258 = arith.mulf %253, %257 : vector<16x32xf32>
    %259 = vector.broadcast %31 : vector<1x32xf32> to vector<16x32xf32>
    %260 = arith.addf %258, %259 : vector<16x32xf32>
    %c1_i32 = arith.constant 1 : i32
    %261 = tpu.dynamic_rotate %253 by %c1_i32 dim 0 : vector<16x32xf32>, i32 -> vector<16x32xf32>
    %c1_i32_73 = arith.constant 1 : i32
    %262 = vector.broadcast %c1_i32_73 : i32 to vector<16x1xi32>
    %263 = arith.cmpi sge, %255, %262 : vector<16x1xi32>
    %264 = arith.extui %263 : vector<16x1xi1> to vector<16x1xi32>
    %265 = arith.sitofp %264 : vector<16x1xi32> to vector<16x1xf32>
    %266 = vector.extract_strided_slice %16 {offsets = [0, 0], sizes = [1, 32], strides = [1, 1]} : vector<3x32xf32> to vector<1x32xf32>
    %267 = vector.broadcast %265 : vector<16x1xf32> to vector<16x32xf32>
    %268 = vector.broadcast %266 : vector<1x32xf32> to vector<16x32xf32>
    %269 = arith.mulf %267, %268 : vector<16x32xf32>
    %270 = arith.mulf %261, %269 : vector<16x32xf32>
    %271 = arith.addf %260, %270 : vector<16x32xf32>
    %c15_i32 = arith.constant 15 : i32
    %272 = tpu.dynamic_rotate %253 by %c15_i32 dim 0 : vector<16x32xf32>, i32 -> vector<16x32xf32>
    %c6_i32 = arith.constant 6 : i32
    %273 = vector.broadcast %c6_i32 : i32 to vector<16x1xi32>
    %274 = arith.cmpi sle, %255, %273 : vector<16x1xi32>
    %275 = arith.extui %274 : vector<16x1xi1> to vector<16x1xi32>
    %276 = arith.sitofp %275 : vector<16x1xi32> to vector<16x1xf32>
    %277 = vector.extract_strided_slice %16 {offsets = [2, 0], sizes = [1, 32], strides = [1, 1]} : vector<3x32xf32> to vector<1x32xf32>
    %278 = vector.broadcast %276 : vector<16x1xf32> to vector<16x32xf32>
    %279 = vector.broadcast %277 : vector<1x32xf32> to vector<16x32xf32>
    %280 = arith.mulf %278, %279 : vector<16x32xf32>
    %281 = arith.mulf %272, %280 : vector<16x32xf32>
    %282 = arith.addf %271, %281 : vector<16x32xf32>
    %cst_74 = arith.constant 5.000000e-01 : f32
    %283 = vector.broadcast %cst_74 : f32 to vector<16x32xf32>
    %284 = arith.mulf %283, %282 : vector<16x32xf32>
    %285 = math.tanh %284 : vector<16x32xf32>
    %cst_75 = arith.constant 5.000000e-01 : f32
    %286 = vector.broadcast %cst_75 : f32 to vector<16x32xf32>
    %287 = arith.mulf %286, %285 : vector<16x32xf32>
    %cst_76 = arith.constant 5.000000e-01 : f32
    %288 = vector.broadcast %cst_76 : f32 to vector<16x32xf32>
    %289 = arith.addf %287, %288 : vector<16x32xf32>
    %290 = arith.mulf %282, %289 : vector<16x32xf32>
    %291 = arith.truncf %290 : vector<16x32xf32> to vector<16x32xbf16>
    %cst_77 = arith.constant dense<0.000000e+00> : vector<16x32xf32>
    %292 = tpu.matmul %291, %15, %cst_77 {dimension_numbers = #tpu.dot_dimension_numbers<[1], [0], [0], [1], [0, 0, 1, 1], [], []>} : vector<16x32xbf16>, vector<32x32xbf16>, vector<16x32xf32> -> vector<16x32xf32>
    %293 = vector.broadcast %32 : vector<1x32xf32> to vector<16x32xf32>
    %294 = arith.addf %292, %293 : vector<16x32xf32>
    %295 = vector.broadcast %41 : vector<16x1xf32> to vector<16x32xf32>
    %296 = arith.mulf %294, %295 : vector<16x32xf32>
    %297 = arith.addf %237, %296 : vector<16x32xf32>
    %cst_78 = arith.constant dense<0.000000e+00> : vector<16xf32>
    %298 = vector.multi_reduction <add>, %297, %cst_78 [1] : vector<16x32xf32> to vector<16xf32>
    %299 = vector.shape_cast %298 : vector<16xf32> to vector<16x1xf32>
    %cst_79 = arith.constant 3.200000e+01 : f32
    %300 = vector.broadcast %cst_79 : f32 to vector<16x1xf32>
    %301 = arith.divf %299, %300 : vector<16x1xf32>
    %302 = vector.broadcast %301 : vector<16x1xf32> to vector<16x32xf32>
    %303 = arith.subf %297, %302 : vector<16x32xf32>
    %304 = arith.mulf %303, %303 : vector<16x32xf32>
    %cst_80 = arith.constant dense<0.000000e+00> : vector<16xf32>
    %305 = vector.multi_reduction <add>, %304, %cst_80 [1] : vector<16x32xf32> to vector<16xf32>
    %306 = vector.shape_cast %305 : vector<16xf32> to vector<16x1xf32>
    %cst_81 = arith.constant 3.200000e+01 : f32
    %307 = vector.broadcast %cst_81 : f32 to vector<16x1xf32>
    %308 = arith.divf %306, %307 : vector<16x1xf32>
    %309 = vector.broadcast %301 : vector<16x1xf32> to vector<16x32xf32>
    %310 = arith.subf %297, %309 : vector<16x32xf32>
    %cst_82 = arith.constant 9.99999974E-6 : f32
    %311 = vector.broadcast %cst_82 : f32 to vector<16x1xf32>
    %312 = arith.addf %308, %311 : vector<16x1xf32>
    %313 = math.rsqrt %312 : vector<16x1xf32>
    %314 = vector.broadcast %313 : vector<16x1xf32> to vector<16x32xf32>
    %315 = arith.mulf %310, %314 : vector<16x32xf32>
    %316 = vector.broadcast %23 : vector<1x32xf32> to vector<16x32xf32>
    %317 = arith.mulf %315, %316 : vector<16x32xf32>
    %318 = vector.broadcast %24 : vector<1x32xf32> to vector<16x32xf32>
    %319 = arith.addf %317, %318 : vector<16x32xf32>
    %320 = arith.truncf %319 : vector<16x32xf32> to vector<16x32xbf16>
    %cst_83 = arith.constant dense<0.000000e+00> : vector<16x32xf32>
    %321 = tpu.matmul %320, %11, %cst_83 {dimension_numbers = #tpu.dot_dimension_numbers<[1], [0], [0], [1], [0, 0, 1, 1], [], []>} : vector<16x32xbf16>, vector<32x32xbf16>, vector<16x32xf32> -> vector<16x32xf32>
    %322 = vector.broadcast %29 : vector<1x32xf32> to vector<16x32xf32>
    %323 = arith.addf %321, %322 : vector<16x32xf32>
    %cst_84 = arith.constant 0.000000e+00 : f32
    %324 = vector.broadcast %cst_84 : f32 to vector<16x32xf32>
    %325 = arith.maximumf %323, %324 : vector<16x32xf32>
    %326 = arith.truncf %325 : vector<16x32xf32> to vector<16x32xbf16>
    %cst_85 = arith.constant dense<0.000000e+00> : vector<16x32xf32>
    %327 = tpu.matmul %326, %13, %cst_85 {dimension_numbers = #tpu.dot_dimension_numbers<[1], [0], [0], [1], [0, 0, 1, 1], [], []>} : vector<16x32xbf16>, vector<32x32xbf16>, vector<16x32xf32> -> vector<16x32xf32>
    %328 = arith.addf %319, %327 : vector<16x32xf32>
    %329 = vector.broadcast %30 : vector<1x32xf32> to vector<16x32xf32>
    %330 = arith.addf %328, %329 : vector<16x32xf32>
    %cst_86 = arith.constant dense<0.000000e+00> : vector<16xf32>
    %331 = vector.multi_reduction <add>, %330, %cst_86 [1] : vector<16x32xf32> to vector<16xf32>
    %332 = vector.shape_cast %331 : vector<16xf32> to vector<16x1xf32>
    %cst_87 = arith.constant 3.200000e+01 : f32
    %333 = vector.broadcast %cst_87 : f32 to vector<16x1xf32>
    %334 = arith.divf %332, %333 : vector<16x1xf32>
    %335 = vector.broadcast %334 : vector<16x1xf32> to vector<16x32xf32>
    %336 = arith.subf %330, %335 : vector<16x32xf32>
    %337 = arith.mulf %336, %336 : vector<16x32xf32>
    %cst_88 = arith.constant dense<0.000000e+00> : vector<16xf32>
    %338 = vector.multi_reduction <add>, %337, %cst_88 [1] : vector<16x32xf32> to vector<16xf32>
    %339 = vector.shape_cast %338 : vector<16xf32> to vector<16x1xf32>
    %cst_89 = arith.constant 3.200000e+01 : f32
    %340 = vector.broadcast %cst_89 : f32 to vector<16x1xf32>
    %341 = arith.divf %339, %340 : vector<16x1xf32>
    %342 = vector.broadcast %334 : vector<16x1xf32> to vector<16x32xf32>
    %343 = arith.subf %330, %342 : vector<16x32xf32>
    %cst_90 = arith.constant 9.99999974E-6 : f32
    %344 = vector.broadcast %cst_90 : f32 to vector<16x1xf32>
    %345 = arith.addf %341, %344 : vector<16x1xf32>
    %346 = math.rsqrt %345 : vector<16x1xf32>
    %347 = vector.broadcast %346 : vector<16x1xf32> to vector<16x32xf32>
    %348 = arith.mulf %343, %347 : vector<16x32xf32>
    %349 = vector.broadcast %25 : vector<1x32xf32> to vector<16x32xf32>
    %350 = arith.mulf %348, %349 : vector<16x32xf32>
    %351 = vector.broadcast %26 : vector<1x32xf32> to vector<16x32xf32>
    %352 = arith.addf %350, %351 : vector<16x32xf32>
    %353 = vector.shape_cast %352 : vector<16x32xf32> to vector<2x8x32xf32>
    %c0_91 = arith.constant 0 : index
    %c0_92 = arith.constant 0 : index
    %c0_93 = arith.constant 0 : index
    %354 = vector.load %arg11[%c0_91, %c0_92, %c0_93] : memref<2x8x32xf32, #tpu.memory_space<vmem>>, vector<2x8x32xf32>
    tpu.vector_store %arg11[%c0_91, %c0_92, %c0_93], %353 {strides = array<i32>} : memref<2x8x32xf32, #tpu.memory_space<vmem>>, vector<2x8x32xf32>,
    return
  }
  func.func @transform_0(%arg0: i32) -> (i32, i32, i32) {
    %c0_i32 = arith.constant 0 : i32
    %c0_i32_0 = arith.constant 0 : i32
    %c0_i32_1 = arith.constant 0 : i32
    return %arg0, %c0_i32, %c0_i32_0 : i32, i32, i32
  }
  func.func @transform_1(%arg0: i32) -> (i32, i32, i32) {
    %c0_i32 = arith.constant 0 : i32
    %c0_i32_0 = arith.constant 0 : i32
    %c0_i32_1 = arith.constant 0 : i32
    return %arg0, %c0_i32, %c0_i32_0 : i32, i32, i32
  }
  func.func @transform_2(%arg0: i32) -> (i32, i32, i32) {
    %c0_i32 = arith.constant 0 : i32
    %c0_i32_0 = arith.constant 0 : i32
    %c0_i32_1 = arith.constant 0 : i32
    return %arg0, %c0_i32, %c0_i32_0 : i32, i32, i32
  }
  func.func @transform_3(%arg0: i32) -> (i32, i32) {
    %c0_i32 = arith.constant 0 : i32
    %c0_i32_0 = arith.constant 0 : i32
    %c0_i32_1 = arith.constant 0 : i32
    return %c0_i32, %c0_i32_0 : i32, i32
  }
  func.func @transform_4(%arg0: i32) -> (i32, i32) {
    %c0_i32 = arith.constant 0 : i32
    %c0_i32_0 = arith.constant 0 : i32
    %c0_i32_1 = arith.constant 0 : i32
    return %c0_i32, %c0_i32_0 : i32, i32
  }
  func.func @transform_5(%arg0: i32) -> (i32, i32) {
    %c0_i32 = arith.constant 0 : i32
    %c0_i32_0 = arith.constant 0 : i32
    %c0_i32_1 = arith.constant 0 : i32
    return %c0_i32, %c0_i32_0 : i32, i32
  }
  func.func @transform_6(%arg0: i32) -> (i32, i32) {
    %c0_i32 = arith.constant 0 : i32
    %c0_i32_0 = arith.constant 0 : i32
    %c0_i32_1 = arith.constant 0 : i32
    return %c0_i32, %c0_i32_0 : i32, i32
  }
  func.func @transform_7(%arg0: i32) -> (i32, i32, i32) {
    %c0_i32 = arith.constant 0 : i32
    %c0_i32_0 = arith.constant 0 : i32
    %c0_i32_1 = arith.constant 0 : i32
    %c0_i32_2 = arith.constant 0 : i32
    return %c0_i32, %c0_i32_0, %c0_i32_1 : i32, i32, i32
  }
  func.func @transform_8(%arg0: i32) -> (i32, i32) {
    %c0_i32 = arith.constant 0 : i32
    %c0_i32_0 = arith.constant 0 : i32
    %c0_i32_1 = arith.constant 0 : i32
    return %c0_i32, %c0_i32_0 : i32, i32
  }
  func.func @transform_9(%arg0: i32) -> (i32, i32) {
    %c0_i32 = arith.constant 0 : i32
    %c0_i32_0 = arith.constant 0 : i32
    %c0_i32_1 = arith.constant 0 : i32
    return %c0_i32, %c0_i32_0 : i32, i32
  }
  func.func @transform_10(%arg0: i32) -> (i32, i32, i32) {
    %c0_i32 = arith.constant 0 : i32
    %c0_i32_0 = arith.constant 0 : i32
    %c0_i32_1 = arith.constant 0 : i32
    return %arg0, %c0_i32, %c0_i32_0 : i32, i32, i32
  }
}

</mosaic_0001>

<llo_original>
// kernel: squeezeformer_layer.1
$region0: #{squeezeformer_layer.1}
  #allocation0 [shape = 'u32[]', space=smem, size = 0x4, offset = 0x4, fixed_abs, tag = 'smem constant byte address 0x4 - core index']
  #allocation1 [shape = 'u32[144,128]{1,0:T(1,128)}', space=vmem, size = 0x12000, scoped, tag = 'internal scratch']
  %s0 = inlined_call_operand.vmem [shape: f32[2,8,32], index: 0, kind: input, shape index: {}]
  %s1 = inlined_call_operand.vmem [shape: f32[2,1,8], index: 1, kind: input, shape index: {}]
  %s2 = inlined_call_operand.vmem [shape: f32[2,8,1], index: 2, kind: input, shape index: {}]
  %s3 = inlined_call_operand.vmem [shape: bf16[32,96], index: 3, kind: input, shape index: {}]
  %s4 = inlined_call_operand.vmem [shape: f32[1,96], index: 4, kind: input, shape index: {}]
  %s5 = inlined_call_operand.vmem [shape: bf16[32,64], index: 5, kind: input, shape index: {}]
  %s6 = inlined_call_operand.vmem [shape: f32[1,64], index: 6, kind: input, shape index: {}]
  %s7 = inlined_call_operand.vmem [shape: bf16[6,32,32], index: 7, kind: input, shape index: {}]
  %s8 = inlined_call_operand.vmem [shape: f32[15,32], index: 8, kind: input, shape index: {}]
  %s9 = inlined_call_operand.vmem [shape: f32[3,32], index: 9, kind: input, shape index: {}]
  %s10 = inlined_call_operand.hbm [shape: f32[2,8,32], index: 10, kind: output, shape index: {}]
  %s11 = sld [smem:[#allocation0]]
  $region50: #{squeezeformer_layer.1} parent=0
    _
  %s13 = ssub.s32 1, %s11
  %s14 = scalar_select 0, %s13, %s11
  $region1: #{squeezeformer_layer.1} parent=0
    #allocation2 [shape = 'u8[8192]{0}', space=vmem, size = 0x2000, scoped, tag = 'output window, operand 0, single buffered']
    #allocation3 [shape = 's32[1]{0}', space=sflag, size = 0x4, scoped, tag = 'scoped memory for squeezeformer_layer.1']
    %15 = vsyncpa [#allocation3], 0
    // Predicated region
    $region2: #{squeezeformer_layer.1} parent=1 // pred_check
      _
    $region3: #{squeezeformer_layer.1} parent=1 // pred_check_branch
      %17 = sbr.rel (0) target = $region5
    $region4: #{squeezeformer_layer.1} parent=1 // pred_region
      _
    $region5: #{squeezeformer_layer.1} parent=1 // pred_fallthru
      _
    // Predicated region
    $region6: #{squeezeformer_layer.1} parent=1 // pred_check
      _
    $region7: #{squeezeformer_layer.1} parent=1 // pred_check_branch
      %19 = sbr.rel (0) target = $region9
    $region8: #{squeezeformer_layer.1} parent=1 // pred_region
      _
    $region9: #{squeezeformer_layer.1} parent=1 // pred_fallthru
      _
    // Predicated region
    $region10: #{squeezeformer_layer.1} parent=1 // pred_check
      _
    $region11: #{squeezeformer_layer.1} parent=1 // pred_check_branch
      %21 = sbr.rel (0) target = $region13
    $region12: #{squeezeformer_layer.1} parent=1 // pred_region
      _
    $region13: #{squeezeformer_layer.1} parent=1 // pred_fallthru
      _
    // Predicated region
    $region14: #{squeezeformer_layer.1} parent=1 // pred_check
      _
    $region15: #{squeezeformer_layer.1} parent=1 // pred_check_branch
      %23 = sbr.rel (0) target = $region17
    $region16: #{squeezeformer_layer.1} parent=1 // pred_region
      _
    $region17: #{squeezeformer_layer.1} parent=1 // pred_fallthru
      _
    // Predicated region
    $region18: #{squeezeformer_layer.1} parent=1 // pred_check
      _
    $region19: #{squeezeformer_layer.1} parent=1 // pred_check_branch
      %25 = sbr.rel (0) target = $region21
    $region20: #{squeezeformer_layer.1} parent=1 // pred_region
      _
    $region21: #{squeezeformer_layer.1} parent=1 // pred_fallthru
      _
    // Predicated region
    $region22: #{squeezeformer_layer.1} parent=1 // pred_check
      _
    $region23: #{squeezeformer_layer.1} parent=1 // pred_check_branch
      %27 = sbr.rel (0) target = $region25
    $region24: #{squeezeformer_layer.1} parent=1 // pred_region
      _
    $region25: #{squeezeformer_layer.1} parent=1 // pred_fallthru
      _
    // Predicated region
    $region26: #{squeezeformer_layer.1} parent=1 // pred_check
      _
    $region27: #{squeezeformer_layer.1} parent=1 // pred_check_branch
      %29 = sbr.rel (0) target = $region29
    $region28: #{squeezeformer_layer.1} parent=1 // pred_region
      _
    $region29: #{squeezeformer_layer.1} parent=1 // pred_fallthru
      _
    // Predicated region
    $region30: #{squeezeformer_layer.1} parent=1 // pred_check
      _
    $region31: #{squeezeformer_layer.1} parent=1 // pred_check_branch
      %31 = sbr.rel (0) target = $region33
    $region32: #{squeezeformer_layer.1} parent=1 // pred_region
      _
    $region33: #{squeezeformer_layer.1} parent=1 // pred_fallthru
      _
    // Predicated region
    $region34: #{squeezeformer_layer.1} parent=1 // pred_check
      _
    $region35: #{squeezeformer_layer.1} parent=1 // pred_check_branch
      %33 = sbr.rel (0) target = $region37
    $region36: #{squeezeformer_layer.1} parent=1 // pred_region
      _
    $region37: #{squeezeformer_layer.1} parent=1 // pred_fallthru
      _
    // Predicated region
    $region38: #{squeezeformer_layer.1} parent=1 // pred_check
      _
    $region39: #{squeezeformer_layer.1} parent=1 // pred_check_branch
      %35 = sbr.rel (0) target = $region41
    $region40: #{squeezeformer_layer.1} parent=1 // pred_region
      _
    $region41: #{squeezeformer_layer.1} parent=1 // pred_fallthru
      _
    %v37 = vld [vmem:[%s3] sm:$0xf]
    %v38 = vld [vmem:[%s3 + $0x4] sm:$0xf]
    %v39 = vld [vmem:[%s3 + $0x8] sm:$0xf]
    %v40 = vld [vmem:[%s3 + $0xc] sm:$0xf]
    %v41 = vld [vmem:[%s4] sm:$0x1]
    %v42 = vld [vmem:[%s5] sm:$0xf]
    %v43 = vld [vmem:[%s5 + $0x4] sm:$0xf]
    %v44 = vld [vmem:[%s5 + $0x8] sm:$0xf]
    %v45 = vld [vmem:[%s5 + $0xc] sm:$0xf]
    %v46 = vld [vmem:[%s6] sm:$0x1]
    %v47 = vld [vmem:[%s7] sm:$0xf]
    %v48 = vld [vmem:[%s7 + $0x4] sm:$0xf]
    %v49 = vld [vmem:[%s7 + $0x8] sm:$0xf]
    %v50 = vld [vmem:[%s7 + $0xc] sm:$0xf]
    %s51 = scalar_lea.vmem %s7, 16
    %v52 = vld [vmem:[%s51] sm:$0xf]
    %v53 = vld [vmem:[%s51 + $0x4] sm:$0xf]
    %v54 = vld [vmem:[%s51 + $0x8] sm:$0xf]
    %v55 = vld [vmem:[%s51 + $0xc] sm:$0xf]
    %s56 = scalar_lea.vmem %s7, 32
    %v57 = vld [vmem:[%s56] sm:$0xf]
    %v58 = vld [vmem:[%s56 + $0x4] sm:$0xf]
    %v59 = vld [vmem:[%s56 + $0x8] sm:$0xf]
    %v60 = vld [vmem:[%s56 + $0xc] sm:$0xf]
    %s61 = scalar_lea.vmem %s7, 48
    %v62 = vld [vmem:[%s61] sm:$0xf]
    %v63 = vld [vmem:[%s61 + $0x4] sm:$0xf]
    %v64 = vld [vmem:[%s61 + $0x8] sm:$0xf]
    %v65 = vld [vmem:[%s61 + $0xc] sm:$0xf]
    %s66 = scalar_lea.vmem %s7, 64
    %v67 = vld [vmem:[%s66] sm:$0xf]
    %v68 = vld [vmem:[%s66 + $0x4] sm:$0xf]
    %v69 = vld [vmem:[%s66 + $0x8] sm:$0xf]
    %v70 = vld [vmem:[%s66 + $0xc] sm:$0xf]
    %s71 = scalar_lea.vmem %s7, 80
    %v72 = vld [vmem:[%s71] sm:$0xf]
    %v73 = vld [vmem:[%s71 + $0x4] sm:$0xf]
    %v74 = vld [vmem:[%s71 + $0x8] sm:$0xf]
    %v75 = vld [vmem:[%s71 + $0xc] sm:$0xf]
    %v76 = vld [vmem:[%s9] sm:$0x7]
    %v77 = vld [vmem:[%s8] sm:$0xff]
    %v78 = vld [vmem:[%s8 + $0x8] sm:$0x7f]
    %v79 = vld [vmem:[%s0] sm:$0xff]
    %v80 = vld [vmem:[%s0 + $0x8] sm:$0xff]
    %v81 = vld [vmem:[%s1] sm:$0x1]
    %v82 = vld [vmem:[%s1 + $0x1] sm:$0x1]
    %v83 = vsub.f32 %v81, 1.0
    %v84 = vsub.f32 %v82, 1.0
    %v85 = vmul.f32 %v83, 1e+30
    %v86 = vmul.f32 %v84, 1e+30
    %v87 = vld [vmem:[%s2] sm:$0xff]
    %v88 = vld [vmem:[%s2 + $0x8] sm:$0xff]
    %v89 = vpack.c.bf16 %v80, %v79
    %v91 = vlaneseq
    %v92 = vshrl.u32 %v91, 7
    %v93 = vsub.s32 0, %v92
    %v94 = vrot.slane %v41, %v93
    %v100 = vunpack.c.l.b16 %v37
    %v101 = vunpack.c.l.b16 %v38
    %v102 = vunpack.c.l.b16 %v39
    %v103 = vunpack.c.l.b16 %v40
    %v104 = vpack.c.b16 %v101, %v100
    %v105 = vpack.c.b16 %v103, %v102
    %vm108 = vcmask 261120
    %v110 = vsel %vm108, %v89, 0
    %112 = vmatprep.subr.bf16.mxu0 0
    %113 = vmatpush1.bf16.msra.mxu0 %v104
    %114 = vmatprep.subr.bf16.mxu0 0
    %115 = vmatpush1.bf16.msra.mxu0 %v105
    %116 = vmatprep.subr.bf16.mxu0 0
    %117 = vmatpush1.bf16.msra.mxu0 0
    %118 = vmatprep.subr.bf16.mxu0 0
    %119 = vmatpush1.bf16.msra.mxu0 0
    %120 = vmatprep.subr.bf16.mxu0 0
    %121 = vmatpush1.bf16.msra.mxu0 0
    %122 = vmatprep.subr.bf16.mxu0 0
    %123 = vmatpush1.bf16.msra.mxu0 0
    %124 = vmatprep.subr.bf16.mxu0 0
    %125 = vmatpush1.bf16.msra.mxu0 0
    %126 = vmatprep.subr.bf16.mxu0 0
    %127 = vmatpush1.bf16.msra.mxu0 0
    %128 = vmatprep.subr.bf16.mxu0 0
    %129 = vmatpush1.bf16.msra.mxu0 0
    %130 = vmatprep.subr.bf16.mxu0 0
    %131 = vmatpush1.bf16.msra.mxu0 0
    %132 = vmatprep.subr.bf16.mxu0 0
    %133 = vmatpush1.bf16.msra.mxu0 0
    %134 = vmatprep.subr.bf16.mxu0 0
    %135 = vmatpush1.bf16.msra.mxu0 0
    %136 = vmatprep.subr.bf16.mxu0 0
    %137 = vmatpush1.bf16.msra.mxu0 0
    %138 = vmatprep.subr.bf16.mxu0 0
    %139 = vmatpush1.bf16.msra.mxu0 0
    %140 = vmatprep.subr.bf16.mxu0 0
    %141 = vmatpush1.bf16.msra.mxu0 0
    %142 = vmatprep.subr.bf16.mxu0 0
    %143 = vmatpush1.bf16.msra.mxu0 0
    %144 = vmatprep.mubr.bf16.mxu0 0
    %145 = vmatmul.mubr.bf16.gmra.mrb[0].mxu0 %v110
    %v146 = vpop.f32.mrb[0].mxu0
    %v147 = vadd.f32 %v94, %v146
    %v148 = vpop.f32.mrb[0].mxu0
    %v149 = vpop.f32.mrb[0].mxu0
    %v150 = vadd.f32 %v94, %v149
    %v151 = vpop.f32.mrb[0].mxu0
    %152 = vdwg.mxu0
    %v153 = vpack.c.bf16 %v147, %v147
    %v154 = vpack.c.bf16 %v150, %v150
    %v155 = vlaneseq
    %v156 = vand.u32 %v155, 127
    %vm157 = vcmp.ge.s32.totalorder %v156, 0
    %vm158 = vcmp.lt.s32.totalorder %v156, 8
    %vm159 = vmand %vm157, %vm158
    %v160 = vsel %vm159, 1, 0
    %v161 = vcvt.s32.f32 %v160
    %v162 = vpack.c.bf16 %v161, %v161
    %v163 = vmul.bf16 %v153, %v162
    %v164 = vmul.bf16 %v154, %v162
    %v167 = vlaneseq
    %v168 = vshrl.u32 %v167, 7
    %v169 = vsub.s32 0, %v168
    %v170 = vrot.slane %v85, %v169
    %v171 = vlaneseq
    %v172 = vshrl.u32 %v171, 7
    %v173 = vsub.s32 0, %v172
    %v174 = vrot.slane %v86, %v173
    %178 = vrot.lane.b32.xlu0 %v153, 96
    %v179 = vpop.permute.xlu0 %178
    %v181 = vsel %vm108, %v163, 0
    %v184 = vsel %vm108, %v179, 0
    %186 = vmatprep.subr.bf16.mxu0 0
    %187 = vmatpush1.bf16.xpose.msra.mxu0 %v184
    %188 = vmatprep.subr.bf16.mxu0 0
    %189 = vmatpush1.bf16.xpose.msra.mxu0 0
    %190 = vmatprep.subr.bf16.mxu0 0
    %191 = vmatpush1.bf16.xpose.msra.mxu0 0
    %192 = vmatprep.subr.bf16.mxu0 0
    %193 = vmatpush1.bf16.xpose.msra.mxu0 0
    %194 = vmatprep.subr.bf16.mxu0 0
    %195 = vmatpush1.bf16.xpose.msra.mxu0 0
    %196 = vmatprep.subr.bf16.mxu0 0
    %197 = vmatpush1.bf16.xpose.msra.mxu0 0
    %198 = vmatprep.subr.bf16.mxu0 0
    %199 = vmatpush1.bf16.xpose.msra.mxu0 0
    %200 = vmatprep.subr.bf16.mxu0 0
    %201 = vmatpush1.bf16.xpose.msra.mxu0 0
    %202 = vmatprep.subr.bf16.mxu0 0
    %203 = vmatpush1.bf16.xpose.msra.mxu0 0
    %204 = vmatprep.subr.bf16.mxu0 0
    %205 = vmatpush1.bf16.xpose.msra.mxu0 0
    %206 = vmatprep.subr.bf16.mxu0 0
    %207 = vmatpush1.bf16.xpose.msra.mxu0 0
    %208 = vmatprep.subr.bf16.mxu0 0
    %209 = vmatpush1.bf16.xpose.msra.mxu0 0
    %210 = vmatprep.subr.bf16.mxu0 0
    %211 = vmatpush1.bf16.xpose.msra.mxu0 0
    %212 = vmatprep.subr.bf16.mxu0 0
    %213 = vmatpush1.bf16.xpose.msra.mxu0 0
    %214 = vmatprep.subr.bf16.mxu0 0
    %215 = vmatpush1.bf16.xpose.msra.mxu0 0
    %216 = vmatprep.subr.bf16.mxu0 0
    %217 = vmatpush1.bf16.xpose.msra.mxu0 0
    %218 = vmatprep.mubr.bf16.mxu0 0
    %219 = vmatmul.mubr.bf16.gmra.mrb[0].mxu0 %v181
    %v220 = vpop.f32.mrb[0].mxu0
    %v221 = vadd.f32 %v170, %v220
    %v222 = vpop.f32.mrb[0].mxu0
    %v223 = vpop.f32.mrb[0].mxu0
    %v224 = vpop.f32.mrb[0].mxu0
    %225 = vdwg.mxu0
    %227 = vrot.lane.b32.xlu0 %v154, 96
    %v228 = vpop.permute.xlu0 %227
    %v230 = vsel %vm108, %v164, 0
    %v233 = vsel %vm108, %v228, 0
    %235 = vmatprep.subr.bf16.mxu0 0
    %236 = vmatpush1.bf16.xpose.msra.mxu0 %v233
    %237 = vmatprep.subr.bf16.mxu0 0
    %238 = vmatpush1.bf16.xpose.msra.mxu0 0
    %239 = vmatprep.subr.bf16.mxu0 0
    %240 = vmatpush1.bf16.xpose.msra.mxu0 0
    %241 = vmatprep.subr.bf16.mxu0 0
    %242 = vmatpush1.bf16.xpose.msra.mxu0 0
    %243 = vmatprep.subr.bf16.mxu0 0
    %244 = vmatpush1.bf16.xpose.msra.mxu0 0
    %245 = vmatprep.subr.bf16.mxu0 0
    %246 = vmatpush1.bf16.xpose.msra.mxu0 0
    %247 = vmatprep.subr.bf16.mxu0 0
    %248 = vmatpush1.bf16.xpose.msra.mxu0 0
    %249 = vmatprep.subr.bf16.mxu0 0
    %250 = vmatpush1.bf16.xpose.msra.mxu0 0
    %251 = vmatprep.subr.bf16.mxu0 0
    %252 = vmatpush1.bf16.xpose.msra.mxu0 0
    %253 = vmatprep.subr.bf16.mxu0 0
    %254 = vmatpush1.bf16.xpose.msra.mxu0 0
    %255 = vmatprep.subr.bf16.mxu0 0
    %256 = vmatpush1.bf16.xpose.msra.mxu0 0
    %257 = vmatprep.subr.bf16.mxu0 0
    %258 = vmatpush1.bf16.xpose.msra.mxu0 0
    %259 = vmatprep.subr.bf16.mxu0 0
    %260 = vmatpush1.bf16.xpose.msra.mxu0 0
    %261 = vmatprep.subr.bf16.mxu0 0
    %262 = vmatpush1.bf16.xpose.msra.mxu0 0
    %263 = vmatprep.subr.bf16.mxu0 0
    %264 = vmatpush1.bf16.xpose.msra.mxu0 0
    %265 = vmatprep.subr.bf16.mxu0 0
    %266 = vmatpush1.bf16.xpose.msra.mxu0 0
    %267 = vmatprep.mubr.bf16.mxu0 0
    %268 = vmatmul.mubr.bf16.gmra.mrb[0].mxu0 %v230
    %v269 = vpop.f32.mrb[0].mxu0
    %v270 = vadd.f32 %v174, %v269
    %v271 = vpop.f32.mrb[0].mxu0
    %v272 = vpop.f32.mrb[0].mxu0
    %v273 = vpop.f32.mrb[0].mxu0
    %274 = vdwg.mxu0
    %vm275 = vcmask 64512
    %v276 = vsel %vm275, %v221, -inf
    %277 = vmax.xlane.f32.xlu0 %v276
    %v278 = vpop.xlane.xlu0 %277
    %v279 = vsel %vm275, %v270, -inf
    %280 = vmax.xlane.f32.xlu0 %v279
    %v281 = vpop.xlane.xlu0 %280
    %v282 = vsub.f32 %v221, %v278
    %v283 = vsub.f32 %v270, %v281
    %v284 = vmul.f32 %v282, 1.442695
    %v285 = vpow.pop %v284
    %v286 = vmul.f32 %v283, 1.442695
    %v287 = vpow.pop %v286
    %v288 = vsel %vm275, %v285, 0.0
    %289 = vadd.xlane.f32.xlu0 %v288
    %v290 = vpop.xlane.xlu0 %289
    %v291 = vsel %vm275, %v287, 0.0
    %292 = vadd.xlane.f32.xlu0 %v291
    %v293 = vpop.xlane.xlu0 %292
    %v294 = vrcp.pop %v290
    %v295 = vrcp.pop %v293
    %v296 = vmul.f32 %v285, %v294
    %v297 = vmul.f32 %v287, %v295
    %v300 = vlaneseq
    %v301 = vshrl.u32 %v300, 7
    %v302 = vsub.s32 0, %v301
    %v303 = vrot.slane %v81, %v302
    %v304 = vlaneseq
    %v305 = vshrl.u32 %v304, 7
    %v306 = vsub.s32 0, %v305
    %v307 = vrot.slane %v82, %v306
    %v310 = vmul.f32 %v296, %v303
    %v311 = vmul.f32 %v297, %v307
    %v312 = vpack.c.bf16 %v310, %v310
    %v313 = vpack.c.bf16 %v311, %v311
    %315 = vrot.lane.b32.xlu0 %v162, 64
    %v316 = vpop.permute.xlu0 %315
    %v318 = vmul.bf16 %v153, %v316
    %v319 = vmul.bf16 %v154, %v316
    %vm320 = vcmp.ge.s32.totalorder %v156, 8
    %vm321 = vcmp.lt.s32.totalorder %v156, 16
    %vm322 = vmand %vm320, %vm321
    %v323 = vsel %vm322, 1, 0
    %v324 = vcvt.s32.f32 %v323
    %v325 = vpack.c.bf16 %v324, %v324
    %v326 = vmul.bf16 %v153, %v325
    %v327 = vmul.bf16 %v154, %v325
    %v329 = vsel %vm108, %v326, 0
    %331 = vmatprep.subr.bf16.mxu0 0
    %332 = vmatpush1.bf16.xpose.msra.mxu0 %v184
    %333 = vmatprep.subr.bf16.mxu0 0
    %334 = vmatpush1.bf16.xpose.msra.mxu0 0
    %335 = vmatprep.subr.bf16.mxu0 0
    %336 = vmatpush1.bf16.xpose.msra.mxu0 0
    %337 = vmatprep.subr.bf16.mxu0 0
    %338 = vmatpush1.bf16.xpose.msra.mxu0 0
    %339 = vmatprep.subr.bf16.mxu0 0
    %340 = vmatpush1.bf16.xpose.msra.mxu0 0
    %341 = vmatprep.subr.bf16.mxu0 0
    %342 = vmatpush1.bf16.xpose.msra.mxu0 0
    %343 = vmatprep.subr.bf16.mxu0 0
    %344 = vmatpush1.bf16.xpose.msra.mxu0 0
    %345 = vmatprep.subr.bf16.mxu0 0
    %346 = vmatpush1.bf16.xpose.msra.mxu0 0
    %347 = vmatprep.subr.bf16.mxu0 0
    %348 = vmatpush1.bf16.xpose.msra.mxu0 0
    %349 = vmatprep.subr.bf16.mxu0 0
    %350 = vmatpush1.bf16.xpose.msra.mxu0 0
    %351 = vmatprep.subr.bf16.mxu0 0
    %352 = vmatpush1.bf16.xpose.msra.mxu0 0
    %353 = vmatprep.subr.bf16.mxu0 0
    %354 = vmatpush1.bf16.xpose.msra.mxu0 0
    %355 = vmatprep.subr.bf16.mxu0 0
    %356 = vmatpush1.bf16.xpose.msra.mxu0 0
    %357 = vmatprep.subr.bf16.mxu0 0
    %358 = vmatpush1.bf16.xpose.msra.mxu0 0
    %359 = vmatprep.subr.bf16.mxu0 0
    %360 = vmatpush1.bf16.xpose.msra.mxu0 0
    %361 = vmatprep.subr.bf16.mxu0 0
    %362 = vmatpush1.bf16.xpose.msra.mxu0 0
    %363 = vmatprep.mubr.bf16.mxu0 0
    %364 = vmatmul.mubr.bf16.gmra.mrb[0].mxu0 %v329
    %v365 = vpop.f32.mrb[0].mxu0
    %v366 = vadd.f32 %v170, %v365
    %v367 = vpop.f32.mrb[0].mxu0
    %v368 = vpop.f32.mrb[0].mxu0
    %v369 = vpop.f32.mrb[0].mxu0
    %370 = vdwg.mxu0
    %v372 = vsel %vm108, %v327, 0
    %374 = vmatprep.subr.bf16.mxu0 0
    %375 = vmatpush1.bf16.xpose.msra.mxu0 %v233
    %376 = vmatprep.subr.bf16.mxu0 0
    %377 = vmatpush1.bf16.xpose.msra.mxu0 0
    %378 = vmatprep.subr.bf16.mxu0 0
    %379 = vmatpush1.bf16.xpose.msra.mxu0 0
    %380 = vmatprep.subr.bf16.mxu0 0
    %381 = vmatpush1.bf16.xpose.msra.mxu0 0
    %382 = vmatprep.subr.bf16.mxu0 0
    %383 = vmatpush1.bf16.xpose.msra.mxu0 0
    %384 = vmatprep.subr.bf16.mxu0 0
    %385 = vmatpush1.bf16.xpose.msra.mxu0 0
    %386 = vmatprep.subr.bf16.mxu0 0
    %387 = vmatpush1.bf16.xpose.msra.mxu0 0
    %388 = vmatprep.subr.bf16.mxu0 0
    %389 = vmatpush1.bf16.xpose.msra.mxu0 0
    %390 = vmatprep.subr.bf16.mxu0 0
    %391 = vmatpush1.bf16.xpose.msra.mxu0 0
    %392 = vmatprep.subr.bf16.mxu0 0
    %393 = vmatpush1.bf16.xpose.msra.mxu0 0
    %394 = vmatprep.subr.bf16.mxu0 0
    %395 = vmatpush1.bf16.xpose.msra.mxu0 0
    %396 = vmatprep.subr.bf16.mxu0 0
    %397 = vmatpush1.bf16.xpose.msra.mxu0 0
    %398 = vmatprep.subr.bf16.mxu0 0
    %399 = vmatpush1.bf16.xpose.msra.mxu0 0
    %400 = vmatprep.subr.bf16.mxu0 0
    %401 = vmatpush1.bf16.xpose.msra.mxu0 0
    %402 = vmatprep.subr.bf16.mxu0 0
    %403 = vmatpush1.bf16.xpose.msra.mxu0 0
    %404 = vmatprep.subr.bf16.mxu0 0
    %405 = vmatpush1.bf16.xpose.msra.mxu0 0
    %406 = vmatprep.mubr.bf16.mxu0 0
    %407 = vmatmul.mubr.bf16.gmra.mrb[0].mxu0 %v372
    %v408 = vpop.f32.mrb[0].mxu0
    %v409 = vadd.f32 %v174, %v408
    %v410 = vpop.f32.mrb[0].mxu0
    %v411 = vpop.f32.mrb[0].mxu0
    %v412 = vpop.f32.mrb[0].mxu0
    %413 = vdwg.mxu0
    %v414 = vsel %vm275, %v366, -inf
    %415 = vmax.xlane.f32.xlu0 %v414
    %v416 = vpop.xlane.xlu0 %415
    %v417 = vsel %vm275, %v409, -inf
    %418 = vmax.xlane.f32.xlu0 %v417
    %v419 = vpop.xlane.xlu0 %418
    %v420 = vsub.f32 %v366, %v416
    %v421 = vsub.f32 %v409, %v419
    %v422 = vmul.f32 %v420, 1.442695
    %v423 = vpow.pop %v422
    %v424 = vmul.f32 %v421, 1.442695
    %v425 = vpow.pop %v424
    %v426 = vsel %vm275, %v423, 0.0
    %427 = vadd.xlane.f32.xlu0 %v426
    %v428 = vpop.xlane.xlu0 %427
    %v429 = vsel %vm275, %v425, 0.0
    %430 = vadd.xlane.f32.xlu0 %v429
    %v431 = vpop.xlane.xlu0 %430
    %v432 = vrcp.pop %v428
    %v433 = vrcp.pop %v431
    %v434 = vmul.f32 %v423, %v432
    %v435 = vmul.f32 %v425, %v433
    %v436 = vmul.f32 %v434, %v303
    %v437 = vmul.f32 %v435, %v307
    %v438 = vpack.c.bf16 %v436, %v436
    %v439 = vpack.c.bf16 %v437, %v437
    %441 = vrot.lane.b32.xlu0 %v325, 64
    %v442 = vpop.permute.xlu0 %441
    %v444 = vmul.bf16 %v153, %v442
    %v445 = vmul.bf16 %v154, %v442
    %447 = vrot.lane.b32.xlu0 %v444, 64
    %v448 = vpop.permute.xlu0 %447
    %v450 = vsel %vm275, %v438, 0
    %vm452 = vcmask 1043456
    %v454 = vsel %vm452, %v448, 0
    %456 = vmatprep.subr.bf16.mxu0 0
    %457 = vmatpush1.bf16.msra.mxu0 %v454
    %458 = vmatprep.subr.bf16.mxu0 0
    %459 = vmatpush1.bf16.msra.mxu0 0
    %460 = vmatprep.subr.bf16.mxu0 0
    %461 = vmatpush1.bf16.msra.mxu0 0
    %462 = vmatprep.subr.bf16.mxu0 0
    %463 = vmatpush1.bf16.msra.mxu0 0
    %464 = vmatprep.subr.bf16.mxu0 0
    %465 = vmatpush1.bf16.msra.mxu0 0
    %466 = vmatprep.subr.bf16.mxu0 0
    %467 = vmatpush1.bf16.msra.mxu0 0
    %468 = vmatprep.subr.bf16.mxu0 0
    %469 = vmatpush1.bf16.msra.mxu0 0
    %470 = vmatprep.subr.bf16.mxu0 0
    %471 = vmatpush1.bf16.msra.mxu0 0
    %472 = vmatprep.subr.bf16.mxu0 0
    %473 = vmatpush1.bf16.msra.mxu0 0
    %474 = vmatprep.subr.bf16.mxu0 0
    %475 = vmatpush1.bf16.msra.mxu0 0
    %476 = vmatprep.subr.bf16.mxu0 0
    %477 = vmatpush1.bf16.msra.mxu0 0
    %478 = vmatprep.subr.bf16.mxu0 0
    %479 = vmatpush1.bf16.msra.mxu0 0
    %480 = vmatprep.subr.bf16.mxu0 0
    %481 = vmatpush1.bf16.msra.mxu0 0
    %482 = vmatprep.subr.bf16.mxu0 0
    %483 = vmatpush1.bf16.msra.mxu0 0
    %484 = vmatprep.subr.bf16.mxu0 0
    %485 = vmatpush1.bf16.msra.mxu0 0
    %486 = vmatprep.subr.bf16.mxu0 0
    %487 = vmatpush1.bf16.msra.mxu0 0
    %488 = vmatprep.mubr.bf16.mxu0 0
    %489 = vmatmul.mubr.bf16.gmra.mrb[0].mxu0 %v450
    %v490 = vpop.f32.mrb[0].mxu0
    %v491 = vadd.f32 0.0, %v490
    %v492 = vpop.f32.mrb[0].mxu0
    %v493 = vpop.f32.mrb[0].mxu0
    %v494 = vpop.f32.mrb[0].mxu0
    %495 = vdwg.mxu0
    %497 = vrot.lane.b32.xlu0 %v445, 64
    %v498 = vpop.permute.xlu0 %497
    %v500 = vsel %vm275, %v439, 0
    %v503 = vsel %vm452, %v498, 0
    %505 = vmatprep.subr.bf16.mxu0 0
    %506 = vmatpush1.bf16.msra.mxu0 %v503
    %507 = vmatprep.subr.bf16.mxu0 0
    %508 = vmatpush1.bf16.msra.mxu0 0
    %509 = vmatprep.subr.bf16.mxu0 0
    %510 = vmatpush1.bf16.msra.mxu0 0
    %511 = vmatprep.subr.bf16.mxu0 0
    %512 = vmatpush1.bf16.msra.mxu0 0
    %513 = vmatprep.subr.bf16.mxu0 0
    %514 = vmatpush1.bf16.msra.mxu0 0
    %515 = vmatprep.subr.bf16.mxu0 0
    %516 = vmatpush1.bf16.msra.mxu0 0
    %517 = vmatprep.subr.bf16.mxu0 0
    %518 = vmatpush1.bf16.msra.mxu0 0
    %519 = vmatprep.subr.bf16.mxu0 0
    %520 = vmatpush1.bf16.msra.mxu0 0
    %521 = vmatprep.subr.bf16.mxu0 0
    %522 = vmatpush1.bf16.msra.mxu0 0
    %523 = vmatprep.subr.bf16.mxu0 0
    %524 = vmatpush1.bf16.msra.mxu0 0
    %525 = vmatprep.subr.bf16.mxu0 0
    %526 = vmatpush1.bf16.msra.mxu0 0
    %527 = vmatprep.subr.bf16.mxu0 0
    %528 = vmatpush1.bf16.msra.mxu0 0
    %529 = vmatprep.subr.bf16.mxu0 0
    %530 = vmatpush1.bf16.msra.mxu0 0
    %531 = vmatprep.subr.bf16.mxu0 0
    %532 = vmatpush1.bf16.msra.mxu0 0
    %533 = vmatprep.subr.bf16.mxu0 0
    %534 = vmatpush1.bf16.msra.mxu0 0
    %535 = vmatprep.subr.bf16.mxu0 0
    %536 = vmatpush1.bf16.msra.mxu0 0
    %537 = vmatprep.mubr.bf16.mxu0 0
    %538 = vmatmul.mubr.bf16.gmra.mrb[0].mxu0 %v500
    %v539 = vpop.f32.mrb[0].mxu0
    %v540 = vadd.f32 0.0, %v539
    %v541 = vpop.f32.mrb[0].mxu0
    %v542 = vpop.f32.mrb[0].mxu0
    %v543 = vpop.f32.mrb[0].mxu0
    %544 = vdwg.mxu0
    %546 = vrot.lane.b32.xlu0 %v318, 64
    %v547 = vpop.permute.xlu0 %546
    %v549 = vsel %vm275, %v312, 0
    %v552 = vsel %vm452, %v547, 0
    %554 = vmatprep.subr.bf16.mxu0 0
    %555 = vmatpush1.bf16.msra.mxu0 %v552
    %556 = vmatprep.subr.bf16.mxu0 0
    %557 = vmatpush1.bf16.msra.mxu0 0
    %558 = vmatprep.subr.bf16.mxu0 0
    %559 = vmatpush1.bf16.msra.mxu0 0
    %560 = vmatprep.subr.bf16.mxu0 0
    %561 = vmatpush1.bf16.msra.mxu0 0
    %562 = vmatprep.subr.bf16.mxu0 0
    %563 = vmatpush1.bf16.msra.mxu0 0
    %564 = vmatprep.subr.bf16.mxu0 0
    %565 = vmatpush1.bf16.msra.mxu0 0
    %566 = vmatprep.subr.bf16.mxu0 0
    %567 = vmatpush1.bf16.msra.mxu0 0
    %568 = vmatprep.subr.bf16.mxu0 0
    %569 = vmatpush1.bf16.msra.mxu0 0
    %570 = vmatprep.subr.bf16.mxu0 0
    %571 = vmatpush1.bf16.msra.mxu0 0
    %572 = vmatprep.subr.bf16.mxu0 0
    %573 = vmatpush1.bf16.msra.mxu0 0
    %574 = vmatprep.subr.bf16.mxu0 0
    %575 = vmatpush1.bf16.msra.mxu0 0
    %576 = vmatprep.subr.bf16.mxu0 0
    %577 = vmatpush1.bf16.msra.mxu0 0
    %578 = vmatprep.subr.bf16.mxu0 0
    %579 = vmatpush1.bf16.msra.mxu0 0
    %580 = vmatprep.subr.bf16.mxu0 0
    %581 = vmatpush1.bf16.msra.mxu0 0
    %582 = vmatprep.subr.bf16.mxu0 0
    %583 = vmatpush1.bf16.msra.mxu0 0
    %584 = vmatprep.subr.bf16.mxu0 0
    %585 = vmatpush1.bf16.msra.mxu0 0
    %586 = vmatprep.mubr.bf16.mxu0 0
    %587 = vmatmul.mubr.bf16.gmra.mrb[0].mxu0 %v549
    %v588 = vpop.f32.mrb[0].mxu0
    %v589 = vadd.f32 %v491, %v588
    %v590 = vpop.f32.mrb[0].mxu0
    %v591 = vpop.f32.mrb[0].mxu0
    %v592 = vpop.f32.mrb[0].mxu0
    %593 = vdwg.mxu0
    %595 = vrot.lane.b32.xlu0 %v319, 64
    %v596 = vpop.permute.xlu0 %595
    %v598 = vsel %vm275, %v313, 0
    %v601 = vsel %vm452, %v596, 0
    %603 = vmatprep.subr.bf16.mxu0 0
    %604 = vmatpush1.bf16.msra.mxu0 %v601
    %605 = vmatprep.subr.bf16.mxu0 0
    %606 = vmatpush1.bf16.msra.mxu0 0
    %607 = vmatprep.subr.bf16.mxu0 0
    %608 = vmatpush1.bf16.msra.mxu0 0
    %609 = vmatprep.subr.bf16.mxu0 0
    %610 = vmatpush1.bf16.msra.mxu0 0
    %611 = vmatprep.subr.bf16.mxu0 0
    %612 = vmatpush1.bf16.msra.mxu0 0
    %613 = vmatprep.subr.bf16.mxu0 0
    %614 = vmatpush1.bf16.msra.mxu0 0
    %615 = vmatprep.subr.bf16.mxu0 0
    %616 = vmatpush1.bf16.msra.mxu0 0
    %617 = vmatprep.subr.bf16.mxu0 0
    %618 = vmatpush1.bf16.msra.mxu0 0
    %619 = vmatprep.subr.bf16.mxu0 0
    %620 = vmatpush1.bf16.msra.mxu0 0
    %621 = vmatprep.subr.bf16.mxu0 0
    %622 = vmatpush1.bf16.msra.mxu0 0
    %623 = vmatprep.subr.bf16.mxu0 0
    %624 = vmatpush1.bf16.msra.mxu0 0
    %625 = vmatprep.subr.bf16.mxu0 0
    %626 = vmatpush1.bf16.msra.mxu0 0
    %627 = vmatprep.subr.bf16.mxu0 0
    %628 = vmatpush1.bf16.msra.mxu0 0
    %629 = vmatprep.subr.bf16.mxu0 0
    %630 = vmatpush1.bf16.msra.mxu0 0
    %631 = vmatprep.subr.bf16.mxu0 0
    %632 = vmatpush1.bf16.msra.mxu0 0
    %633 = vmatprep.subr.bf16.mxu0 0
    %634 = vmatpush1.bf16.msra.mxu0 0
    %635 = vmatprep.mubr.bf16.mxu0 0
    %636 = vmatmul.mubr.bf16.gmra.mrb[0].mxu0 %v598
    %v637 = vpop.f32.mrb[0].mxu0
    %v638 = vadd.f32 %v540, %v637
    %v639 = vpop.f32.mrb[0].mxu0
    %v640 = vpop.f32.mrb[0].mxu0
    %v641 = vpop.f32.mrb[0].mxu0
    %642 = vdwg.mxu0
    %vm643 = vcmp.ge.s32.totalorder %v156, 16
    %vm644 = vcmp.lt.s32.totalorder %v156, 24
    %vm645 = vmand %vm643, %vm644
    %v646 = vsel %vm645, 1, 0
    %v647 = vcvt.s32.f32 %v646
    %v648 = vpack.c.bf16 %v647, %v647
    %v649 = vmul.bf16 %v153, %v648
    %v650 = vmul.bf16 %v154, %v648
    %v652 = vsel %vm108, %v649, 0
    %654 = vmatprep.subr.bf16.mxu0 0
    %655 = vmatpush1.bf16.xpose.msra.mxu0 %v184
    %656 = vmatprep.subr.bf16.mxu0 0
    %657 = vmatpush1.bf16.xpose.msra.mxu0 0
    %658 = vmatprep.subr.bf16.mxu0 0
    %659 = vmatpush1.bf16.xpose.msra.mxu0 0
    %660 = vmatprep.subr.bf16.mxu0 0
    %661 = vmatpush1.bf16.xpose.msra.mxu0 0
    %662 = vmatprep.subr.bf16.mxu0 0
    %663 = vmatpush1.bf16.xpose.msra.mxu0 0
    %664 = vmatprep.subr.bf16.mxu0 0
    %665 = vmatpush1.bf16.xpose.msra.mxu0 0
    %666 = vmatprep.subr.bf16.mxu0 0
    %667 = vmatpush1.bf16.xpose.msra.mxu0 0
    %668 = vmatprep.subr.bf16.mxu0 0
    %669 = vmatpush1.bf16.xpose.msra.mxu0 0
    %670 = vmatprep.subr.bf16.mxu0 0
    %671 = vmatpush1.bf16.xpose.msra.mxu0 0
    %672 = vmatprep.subr.bf16.mxu0 0
    %673 = vmatpush1.bf16.xpose.msra.mxu0 0
    %674 = vmatprep.subr.bf16.mxu0 0
    %675 = vmatpush1.bf16.xpose.msra.mxu0 0
    %676 = vmatprep.subr.bf16.mxu0 0
    %677 = vmatpush1.bf16.xpose.msra.mxu0 0
    %678 = vmatprep.subr.bf16.mxu0 0
    %679 = vmatpush1.bf16.xpose.msra.mxu0 0
    %680 = vmatprep.subr.bf16.mxu0 0
    %681 = vmatpush1.bf16.xpose.msra.mxu0 0
    %682 = vmatprep.subr.bf16.mxu0 0
    %683 = vmatpush1.bf16.xpose.msra.mxu0 0
    %684 = vmatprep.subr.bf16.mxu0 0
    %685 = vmatpush1.bf16.xpose.msra.mxu0 0
    %686 = vmatprep.mubr.bf16.mxu0 0
    %687 = vmatmul.mubr.bf16.gmra.mrb[0].mxu0 %v652
    %v688 = vpop.f32.mrb[0].mxu0
    %v689 = vadd.f32 %v170, %v688
    %v690 = vpop.f32.mrb[0].mxu0
    %v691 = vpop.f32.mrb[0].mxu0
    %v692 = vpop.f32.mrb[0].mxu0
    %693 = vdwg.mxu0
    %v695 = vsel %vm108, %v650, 0
    %697 = vmatprep.subr.bf16.mxu0 0
    %698 = vmatpush1.bf16.xpose.msra.mxu0 %v233
    %699 = vmatprep.subr.bf16.mxu0 0
    %700 = vmatpush1.bf16.xpose.msra.mxu0 0
    %701 = vmatprep.subr.bf16.mxu0 0
    %702 = vmatpush1.bf16.xpose.msra.mxu0 0
    %703 = vmatprep.subr.bf16.mxu0 0
    %704 = vmatpush1.bf16.xpose.msra.mxu0 0
    %705 = vmatprep.subr.bf16.mxu0 0
    %706 = vmatpush1.bf16.xpose.msra.mxu0 0
    %707 = vmatprep.subr.bf16.mxu0 0
    %708 = vmatpush1.bf16.xpose.msra.mxu0 0
    %709 = vmatprep.subr.bf16.mxu0 0
    %710 = vmatpush1.bf16.xpose.msra.mxu0 0
    %711 = vmatprep.subr.bf16.mxu0 0
    %712 = vmatpush1.bf16.xpose.msra.mxu0 0
    %713 = vmatprep.subr.bf16.mxu0 0
    %714 = vmatpush1.bf16.xpose.msra.mxu0 0
    %715 = vmatprep.subr.bf16.mxu0 0
    %716 = vmatpush1.bf16.xpose.msra.mxu0 0
    %717 = vmatprep.subr.bf16.mxu0 0
    %718 = vmatpush1.bf16.xpose.msra.mxu0 0
    %719 = vmatprep.subr.bf16.mxu0 0
    %720 = vmatpush1.bf16.xpose.msra.mxu0 0
    %721 = vmatprep.subr.bf16.mxu0 0
    %722 = vmatpush1.bf16.xpose.msra.mxu0 0
    %723 = vmatprep.subr.bf16.mxu0 0
    %724 = vmatpush1.bf16.xpose.msra.mxu0 0
    %725 = vmatprep.subr.bf16.mxu0 0
    %726 = vmatpush1.bf16.xpose.msra.mxu0 0
    %727 = vmatprep.subr.bf16.mxu0 0
    %728 = vmatpush1.bf16.xpose.msra.mxu0 0
    %729 = vmatprep.mubr.bf16.mxu0 0
    %730 = vmatmul.mubr.bf16.gmra.mrb[0].mxu0 %v695
    %v731 = vpop.f32.mrb[0].mxu0
    %v732 = vadd.f32 %v174, %v731
    %v733 = vpop.f32.mrb[0].mxu0
    %v734 = vpop.f32.mrb[0].mxu0
    %v735 = vpop.f32.mrb[0].mxu0
    %736 = vdwg.mxu0
    %v737 = vsel %vm275, %v689, -inf
    %738 = vmax.xlane.f32.xlu0 %v737
    %v739 = vpop.xlane.xlu0 %738
    %v740 = vsel %vm275, %v732, -inf
    %741 = vmax.xlane.f32.xlu0 %v740
    %v742 = vpop.xlane.xlu0 %741
    %v743 = vsub.f32 %v689, %v739
    %v744 = vsub.f32 %v732, %v742
    %v745 = vmul.f32 %v743, 1.442695
    %v746 = vpow.pop %v745
    %v747 = vmul.f32 %v744, 1.442695
    %v748 = vpow.pop %v747
    %v749 = vsel %vm275, %v746, 0.0
    %750 = vadd.xlane.f32.xlu0 %v749
    %v751 = vpop.xlane.xlu0 %750
    %v752 = vsel %vm275, %v748, 0.0
    %753 = vadd.xlane.f32.xlu0 %v752
    %v754 = vpop.xlane.xlu0 %753
    %v755 = vrcp.pop %v751
    %v756 = vrcp.pop %v754
    %v757 = vmul.f32 %v746, %v755
    %v758 = vmul.f32 %v748, %v756
    %v759 = vmul.f32 %v757, %v303
    %v760 = vmul.f32 %v758, %v307
    %v761 = vpack.c.bf16 %v759, %v759
    %v762 = vpack.c.bf16 %v760, %v760
    %764 = vrot.lane.b32.xlu0 %v648, 64
    %v765 = vpop.permute.xlu0 %764
    %v767 = vmul.bf16 %v153, %v765
    %v768 = vmul.bf16 %v154, %v765
    %770 = vrot.lane.b32.xlu0 %v767, 64
    %v771 = vpop.permute.xlu0 %770
    %v773 = vsel %vm275, %v761, 0
    %v776 = vsel %vm452, %v771, 0
    %778 = vmatprep.subr.bf16.mxu0 0
    %779 = vmatpush1.bf16.msra.mxu0 %v776
    %780 = vmatprep.subr.bf16.mxu0 0
    %781 = vmatpush1.bf16.msra.mxu0 0
    %782 = vmatprep.subr.bf16.mxu0 0
    %783 = vmatpush1.bf16.msra.mxu0 0
    %784 = vmatprep.subr.bf16.mxu0 0
    %785 = vmatpush1.bf16.msra.mxu0 0
    %786 = vmatprep.subr.bf16.mxu0 0
    %787 = vmatpush1.bf16.msra.mxu0 0
    %788 = vmatprep.subr.bf16.mxu0 0
    %789 = vmatpush1.bf16.msra.mxu0 0
    %790 = vmatprep.subr.bf16.mxu0 0
    %791 = vmatpush1.bf16.msra.mxu0 0
    %792 = vmatprep.subr.bf16.mxu0 0
    %793 = vmatpush1.bf16.msra.mxu0 0
    %794 = vmatprep.subr.bf16.mxu0 0
    %795 = vmatpush1.bf16.msra.mxu0 0
    %796 = vmatprep.subr.bf16.mxu0 0
    %797 = vmatpush1.bf16.msra.mxu0 0
    %798 = vmatprep.subr.bf16.mxu0 0
    %799 = vmatpush1.bf16.msra.mxu0 0
    %800 = vmatprep.subr.bf16.mxu0 0
    %801 = vmatpush1.bf16.msra.mxu0 0
    %802 = vmatprep.subr.bf16.mxu0 0
    %803 = vmatpush1.bf16.msra.mxu0 0
    %804 = vmatprep.subr.bf16.mxu0 0
    %805 = vmatpush1.bf16.msra.mxu0 0
    %806 = vmatprep.subr.bf16.mxu0 0
    %807 = vmatpush1.bf16.msra.mxu0 0
    %808 = vmatprep.subr.bf16.mxu0 0
    %809 = vmatpush1.bf16.msra.mxu0 0
    %810 = vmatprep.mubr.bf16.mxu0 0
    %811 = vmatmul.mubr.bf16.gmra.mrb[0].mxu0 %v773
    %v812 = vpop.f32.mrb[0].mxu0
    %v813 = vadd.f32 0.0, %v812
    %v814 = vpop.f32.mrb[0].mxu0
    %v815 = vpop.f32.mrb[0].mxu0
    %v816 = vpop.f32.mrb[0].mxu0
    %817 = vdwg.mxu0
    %819 = vrot.lane.b32.xlu0 %v768, 64
    %v820 = vpop.permute.xlu0 %819
    %v822 = vsel %vm275, %v762, 0
    %v825 = vsel %vm452, %v820, 0
    %827 = vmatprep.subr.bf16.mxu0 0
    %828 = vmatpush1.bf16.msra.mxu0 %v825
    %829 = vmatprep.subr.bf16.mxu0 0
    %830 = vmatpush1.bf16.msra.mxu0 0
    %831 = vmatprep.subr.bf16.mxu0 0
    %832 = vmatpush1.bf16.msra.mxu0 0
    %833 = vmatprep.subr.bf16.mxu0 0
    %834 = vmatpush1.bf16.msra.mxu0 0
    %835 = vmatprep.subr.bf16.mxu0 0
    %836 = vmatpush1.bf16.msra.mxu0 0
    %837 = vmatprep.subr.bf16.mxu0 0
    %838 = vmatpush1.bf16.msra.mxu0 0
    %839 = vmatprep.subr.bf16.mxu0 0
    %840 = vmatpush1.bf16.msra.mxu0 0
    %841 = vmatprep.subr.bf16.mxu0 0
    %842 = vmatpush1.bf16.msra.mxu0 0
    %843 = vmatprep.subr.bf16.mxu0 0
    %844 = vmatpush1.bf16.msra.mxu0 0
    %845 = vmatprep.subr.bf16.mxu0 0
    %846 = vmatpush1.bf16.msra.mxu0 0
    %847 = vmatprep.subr.bf16.mxu0 0
    %848 = vmatpush1.bf16.msra.mxu0 0
    %849 = vmatprep.subr.bf16.mxu0 0
    %850 = vmatpush1.bf16.msra.mxu0 0
    %851 = vmatprep.subr.bf16.mxu0 0
    %852 = vmatpush1.bf16.msra.mxu0 0
    %853 = vmatprep.subr.bf16.mxu0 0
    %854 = vmatpush1.bf16.msra.mxu0 0
    %855 = vmatprep.subr.bf16.mxu0 0
    %856 = vmatpush1.bf16.msra.mxu0 0
    %857 = vmatprep.subr.bf16.mxu0 0
    %858 = vmatpush1.bf16.msra.mxu0 0
    %859 = vmatprep.mubr.bf16.mxu0 0
    %860 = vmatmul.mubr.bf16.gmra.mrb[0].mxu0 %v822
    %v861 = vpop.f32.mrb[0].mxu0
    %v862 = vadd.f32 0.0, %v861
    %v863 = vpop.f32.mrb[0].mxu0
    %v864 = vpop.f32.mrb[0].mxu0
    %v865 = vpop.f32.mrb[0].mxu0
    %866 = vdwg.mxu0
    %v867 = vadd.f32 %v589, %v813
    %v868 = vadd.f32 %v638, %v862
    %vm869 = vcmp.ge.s32.totalorder %v156, 24
    %vm870 = vcmp.lt.s32.totalorder %v156, 32
    %vm871 = vmand %vm869, %vm870
    %v872 = vsel %vm871, 1, 0
    %v873 = vcvt.s32.f32 %v872
    %v874 = vpack.c.bf16 %v873, %v873
    %v875 = vmul.bf16 %v153, %v874
    %v876 = vmul.bf16 %v154, %v874
    %v878 = vsel %vm108, %v875, 0
    %880 = vmatprep.subr.bf16.mxu0 0
    %881 = vmatpush1.bf16.xpose.msra.mxu0 %v184
    %882 = vmatprep.subr.bf16.mxu0 0
    %883 = vmatpush1.bf16.xpose.msra.mxu0 0
    %884 = vmatprep.subr.bf16.mxu0 0
    %885 = vmatpush1.bf16.xpose.msra.mxu0 0
    %886 = vmatprep.subr.bf16.mxu0 0
    %887 = vmatpush1.bf16.xpose.msra.mxu0 0
    %888 = vmatprep.subr.bf16.mxu0 0
    %889 = vmatpush1.bf16.xpose.msra.mxu0 0
    %890 = vmatprep.subr.bf16.mxu0 0
    %891 = vmatpush1.bf16.xpose.msra.mxu0 0
    %892 = vmatprep.subr.bf16.mxu0 0
    %893 = vmatpush1.bf16.xpose.msra.mxu0 0
    %894 = vmatprep.subr.bf16.mxu0 0
    %895 = vmatpush1.bf16.xpose.msra.mxu0 0
    %896 = vmatprep.subr.bf16.mxu0 0
    %897 = vmatpush1.bf16.xpose.msra.mxu0 0
    %898 = vmatprep.subr.bf16.mxu0 0
    %899 = vmatpush1.bf16.xpose.msra.mxu0 0
    %900 = vmatprep.subr.bf16.mxu0 0
    %901 = vmatpush1.bf16.xpose.msra.mxu0 0
    %902 = vmatprep.subr.bf16.mxu0 0
    %903 = vmatpush1.bf16.xpose.msra.mxu0 0
    %904 = vmatprep.subr.bf16.mxu0 0
    %905 = vmatpush1.bf16.xpose.msra.mxu0 0
    %906 = vmatprep.subr.bf16.mxu0 0
    %907 = vmatpush1.bf16.xpose.msra.mxu0 0
    %908 = vmatprep.subr.bf16.mxu0 0
    %909 = vmatpush1.bf16.xpose.msra.mxu0 0
    %910 = vmatprep.subr.bf16.mxu0 0
    %911 = vmatpush1.bf16.xpose.msra.mxu0 0
    %912 = vmatprep.mubr.bf16.mxu0 0
    %913 = vmatmul.mubr.bf16.gmra.mrb[0].mxu0 %v878
    %v914 = vpop.f32.mrb[0].mxu0
    %v915 = vadd.f32 %v170, %v914
    %v916 = vpop.f32.mrb[0].mxu0
    %v917 = vpop.f32.mrb[0].mxu0
    %v918 = vpop.f32.mrb[0].mxu0
    %919 = vdwg.mxu0
    %v921 = vsel %vm108, %v876, 0
    %923 = vmatprep.subr.bf16.mxu0 0
    %924 = vmatpush1.bf16.xpose.msra.mxu0 %v233
    %925 = vmatprep.subr.bf16.mxu0 0
    %926 = vmatpush1.bf16.xpose.msra.mxu0 0
    %927 = vmatprep.subr.bf16.mxu0 0
    %928 = vmatpush1.bf16.xpose.msra.mxu0 0
    %929 = vmatprep.subr.bf16.mxu0 0
    %930 = vmatpush1.bf16.xpose.msra.mxu0 0
    %931 = vmatprep.subr.bf16.mxu0 0
    %932 = vmatpush1.bf16.xpose.msra.mxu0 0
    %933 = vmatprep.subr.bf16.mxu0 0
    %934 = vmatpush1.bf16.xpose.msra.mxu0 0
    %935 = vmatprep.subr.bf16.mxu0 0
    %936 = vmatpush1.bf16.xpose.msra.mxu0 0
    %937 = vmatprep.subr.bf16.mxu0 0
    %938 = vmatpush1.bf16.xpose.msra.mxu0 0
    %939 = vmatprep.subr.bf16.mxu0 0
    %940 = vmatpush1.bf16.xpose.msra.mxu0 0
    %941 = vmatprep.subr.bf16.mxu0 0
    %942 = vmatpush1.bf16.xpose.msra.mxu0 0
    %943 = vmatprep.subr.bf16.mxu0 0
    %944 = vmatpush1.bf16.xpose.msra.mxu0 0
    %945 = vmatprep.subr.bf16.mxu0 0
    %946 = vmatpush1.bf16.xpose.msra.mxu0 0
    %947 = vmatprep.subr.bf16.mxu0 0
    %948 = vmatpush1.bf16.xpose.msra.mxu0 0
    %949 = vmatprep.subr.bf16.mxu0 0
    %950 = vmatpush1.bf16.xpose.msra.mxu0 0
    %951 = vmatprep.subr.bf16.mxu0 0
    %952 = vmatpush1.bf16.xpose.msra.mxu0 0
    %953 = vmatprep.subr.bf16.mxu0 0
    %954 = vmatpush1.bf16.xpose.msra.mxu0 0
    %955 = vmatprep.mubr.bf16.mxu0 0
    %956 = vmatmul.mubr.bf16.gmra.mrb[0].mxu0 %v921
    %v957 = vpop.f32.mrb[0].mxu0
    %v958 = vadd.f32 %v174, %v957
    %v959 = vpop.f32.mrb[0].mxu0
    %v960 = vpop.f32.mrb[0].mxu0
    %v961 = vpop.f32.mrb[0].mxu0
    %962 = vdwg.mxu0
    %v963 = vsel %vm275, %v915, -inf
    %964 = vmax.xlane.f32.xlu0 %v963
    %v965 = vpop.xlane.xlu0 %964
    %v966 = vsel %vm275, %v958, -inf
    %967 = vmax.xlane.f32.xlu0 %v966
    %v968 = vpop.xlane.xlu0 %967
    %v969 = vsub.f32 %v915, %v965
    %v970 = vsub.f32 %v958, %v968
    %v971 = vmul.f32 %v969, 1.442695
    %v972 = vpow.pop %v971
    %v973 = vmul.f32 %v970, 1.442695
    %v974 = vpow.pop %v973
    %v975 = vsel %vm275, %v972, 0.0
    %976 = vadd.xlane.f32.xlu0 %v975
    %v977 = vpop.xlane.xlu0 %976
    %v978 = vsel %vm275, %v974, 0.0
    %979 = vadd.xlane.f32.xlu0 %v978
    %v980 = vpop.xlane.xlu0 %979
    %v981 = vrcp.pop %v977
    %v982 = vrcp.pop %v980
    %v983 = vmul.f32 %v972, %v981
    %v984 = vmul.f32 %v974, %v982
    %v985 = vmul.f32 %v983, %v303
    %v986 = vmul.f32 %v984, %v307
    %v987 = vpack.c.bf16 %v985, %v985
    %v988 = vpack.c.bf16 %v986, %v986
    %990 = vrot.lane.b32.xlu0 %v874, 64
    %v991 = vpop.permute.xlu0 %990
    %v993 = vmul.bf16 %v153, %v991
    %v994 = vmul.bf16 %v154, %v991
    %996 = vrot.lane.b32.xlu0 %v993, 64
    %v997 = vpop.permute.xlu0 %996
    %v999 = vsel %vm275, %v987, 0
    %v1002 = vsel %vm452, %v997, 0
    %1004 = vmatprep.subr.bf16.mxu0 0
    %1005 = vmatpush1.bf16.msra.mxu0 %v1002
    %1006 = vmatprep.subr.bf16.mxu0 0
    %1007 = vmatpush1.bf16.msra.mxu0 0
    %1008 = vmatprep.subr.bf16.mxu0 0
    %1009 = vmatpush1.bf16.msra.mxu0 0
    %1010 = vmatprep.subr.bf16.mxu0 0
    %1011 = vmatpush1.bf16.msra.mxu0 0
    %1012 = vmatprep.subr.bf16.mxu0 0
    %1013 = vmatpush1.bf16.msra.mxu0 0
    %1014 = vmatprep.subr.bf16.mxu0 0
    %1015 = vmatpush1.bf16.msra.mxu0 0
    %1016 = vmatprep.subr.bf16.mxu0 0
    %1017 = vmatpush1.bf16.msra.mxu0 0
    %1018 = vmatprep.subr.bf16.mxu0 0
    %1019 = vmatpush1.bf16.msra.mxu0 0
    %1020 = vmatprep.subr.bf16.mxu0 0
    %1021 = vmatpush1.bf16.msra.mxu0 0
    %1022 = vmatprep.subr.bf16.mxu0 0
    %1023 = vmatpush1.bf16.msra.mxu0 0
    %1024 = vmatprep.subr.bf16.mxu0 0
    %1025 = vmatpush1.bf16.msra.mxu0 0
    %1026 = vmatprep.subr.bf16.mxu0 0
    %1027 = vmatpush1.bf16.msra.mxu0 0
    %1028 = vmatprep.subr.bf16.mxu0 0
    %1029 = vmatpush1.bf16.msra.mxu0 0
    %1030 = vmatprep.subr.bf16.mxu0 0
    %1031 = vmatpush1.bf16.msra.mxu0 0
    %1032 = vmatprep.subr.bf16.mxu0 0
    %1033 = vmatpush1.bf16.msra.mxu0 0
    %1034 = vmatprep.subr.bf16.mxu0 0
    %1035 = vmatpush1.bf16.msra.mxu0 0
    %1036 = vmatprep.mubr.bf16.mxu0 0
    %1037 = vmatmul.mubr.bf16.gmra.mrb[0].mxu0 %v999
    %v1038 = vpop.f32.mrb[0].mxu0
    %v1039 = vadd.f32 0.0, %v1038
    %v1040 = vpop.f32.mrb[0].mxu0
    %v1041 = vpop.f32.mrb[0].mxu0
    %v1042 = vpop.f32.mrb[0].mxu0
    %1043 = vdwg.mxu0
    %1045 = vrot.lane.b32.xlu0 %v994, 64
    %v1046 = vpop.permute.xlu0 %1045
    %v1048 = vsel %vm275, %v988, 0
    %v1051 = vsel %vm452, %v1046, 0
    %1053 = vmatprep.subr.bf16.mxu0 0
    %1054 = vmatpush1.bf16.msra.mxu0 %v1051
    %1055 = vmatprep.subr.bf16.mxu0 0
    %1056 = vmatpush1.bf16.msra.mxu0 0
    %1057 = vmatprep.subr.bf16.mxu0 0
    %1058 = vmatpush1.bf16.msra.mxu0 0
    %1059 = vmatprep.subr.bf16.mxu0 0
    %1060 = vmatpush1.bf16.msra.mxu0 0
    %1061 = vmatprep.subr.bf16.mxu0 0
    %1062 = vmatpush1.bf16.msra.mxu0 0
    %1063 = vmatprep.subr.bf16.mxu0 0
    %1064 = vmatpush1.bf16.msra.mxu0 0
    %1065 = vmatprep.subr.bf16.mxu0 0
    %1066 = vmatpush1.bf16.msra.mxu0 0
    %1067 = vmatprep.subr.bf16.mxu0 0
    %1068 = vmatpush1.bf16.msra.mxu0 0
    %1069 = vmatprep.subr.bf16.mxu0 0
    %1070 = vmatpush1.bf16.msra.mxu0 0
    %1071 = vmatprep.subr.bf16.mxu0 0
    %1072 = vmatpush1.bf16.msra.mxu0 0
    %1073 = vmatprep.subr.bf16.mxu0 0
    %1074 = vmatpush1.bf16.msra.mxu0 0
    %1075 = vmatprep.subr.bf16.mxu0 0
    %1076 = vmatpush1.bf16.msra.mxu0 0
    %1077 = vmatprep.subr.bf16.mxu0 0
    %1078 = vmatpush1.bf16.msra.mxu0 0
    %1079 = vmatprep.subr.bf16.mxu0 0
    %1080 = vmatpush1.bf16.msra.mxu0 0
    %1081 = vmatprep.subr.bf16.mxu0 0
    %1082 = vmatpush1.bf16.msra.mxu0 0
    %1083 = vmatprep.subr.bf16.mxu0 0
    %1084 = vmatpush1.bf16.msra.mxu0 0
    %1085 = vmatprep.mubr.bf16.mxu0 0
    %1086 = vmatmul.mubr.bf16.gmra.mrb[0].mxu0 %v1048
    %v1087 = vpop.f32.mrb[0].mxu0
    %v1088 = vadd.f32 0.0, %v1087
    %v1089 = vpop.f32.mrb[0].mxu0
    %v1090 = vpop.f32.mrb[0].mxu0
    %v1091 = vpop.f32.mrb[0].mxu0
    %1092 = vdwg.mxu0
    %v1093 = vadd.f32 %v867, %v1039
    %v1094 = vadd.f32 %v868, %v1088
    %v1095 = vpack.c.bf16 %v1094, %v1093
    %v1096 = vlaneseq
    %v1097 = vshrl.u32 %v1096, 7
    %v1098 = vsub.s32 0, %v1097
    %v1099 = vrot.slane %v77, %v1098
    %v1104 = vunpack.c.l.b16 %v47
    %v1105 = vunpack.c.l.b16 %v48
    %v1106 = vunpack.c.l.b16 %v49
    %v1107 = vunpack.c.l.b16 %v50
    %v1108 = vpack.c.b16 %v1105, %v1104
    %v1109 = vpack.c.b16 %v1107, %v1106
    %v1113 = vsel %vm108, %v1095, 0
    %1115 = vmatprep.subr.bf16.mxu0 0
    %1116 = vmatpush1.bf16.msra.mxu0 %v1108
    %1117 = vmatprep.subr.bf16.mxu0 0
    %1118 = vmatpush1.bf16.msra.mxu0 %v1109
    %1119 = vmatprep.subr.bf16.mxu0 0
    %1120 = vmatpush1.bf16.msra.mxu0 0
    %1121 = vmatprep.subr.bf16.mxu0 0
    %1122 = vmatpush1.bf16.msra.mxu0 0
    %1123 = vmatprep.subr.bf16.mxu0 0
    %1124 = vmatpush1.bf16.msra.mxu0 0
    %1125 = vmatprep.subr.bf16.mxu0 0
    %1126 = vmatpush1.bf16.msra.mxu0 0
    %1127 = vmatprep.subr.bf16.mxu0 0
    %1128 = vmatpush1.bf16.msra.mxu0 0
    %1129 = vmatprep.subr.bf16.mxu0 0
    %1130 = vmatpush1.bf16.msra.mxu0 0
    %1131 = vmatprep.subr.bf16.mxu0 0
    %1132 = vmatpush1.bf16.msra.mxu0 0
    %1133 = vmatprep.subr.bf16.mxu0 0
    %1134 = vmatpush1.bf16.msra.mxu0 0
    %1135 = vmatprep.subr.bf16.mxu0 0
    %1136 = vmatpush1.bf16.msra.mxu0 0
    %1137 = vmatprep.subr.bf16.mxu0 0
    %1138 = vmatpush1.bf16.msra.mxu0 0
    %1139 = vmatprep.subr.bf16.mxu0 0
    %1140 = vmatpush1.bf16.msra.mxu0 0
    %1141 = vmatprep.subr.bf16.mxu0 0
    %1142 = vmatpush1.bf16.msra.mxu0 0
    %1143 = vmatprep.subr.bf16.mxu0 0
    %1144 = vmatpush1.bf16.msra.mxu0 0
    %1145 = vmatprep.subr.bf16.mxu0 0
    %1146 = vmatpush1.bf16.msra.mxu0 0
    %1147 = vmatprep.mubr.bf16.mxu0 0
    %1148 = vmatmul.mubr.bf16.gmra.mrb[0].mxu0 %v1113
    %v1149 = vpop.f32.mrb[0].mxu0
    %v1150 = vadd.f32 %v1099, %v1149
    %v1151 = vpop.f32.mrb[0].mxu0
    %v1152 = vpop.f32.mrb[0].mxu0
    %v1153 = vadd.f32 %v1099, %v1152
    %v1154 = vpop.f32.mrb[0].mxu0
    %1155 = vdwg.mxu0
    %v1156 = vadd.f32 %v79, %v1150
    %v1157 = vadd.f32 %v80, %v1153
    %v1158 = vsel %vm108, %v1156, 0.0
    %1159 = vadd.xlane.f32.xlu0 %v1158
    %v1160 = vpop.xlane.xlu0 %1159
    %v1161 = vsel %vm108, %v1157, 0.0
    %1162 = vadd.xlane.f32.xlu0 %v1161
    %v1163 = vpop.xlane.xlu0 %1162
    %v1164 = vrcp.pop 32.0
    %v1165 = vmul.f32 %v1160, %v1164
    %v1166 = vmul.f32 %v1163, %v1164
    %v1167 = vsub.f32 %v1156, %v1165
    %v1168 = vsub.f32 %v1157, %v1166
    %v1169 = vmul.f32 %v1167, %v1167
    %v1170 = vmul.f32 %v1168, %v1168
    %v1171 = vsel %vm108, %v1169, 0.0
    %1172 = vadd.xlane.f32.xlu0 %v1171
    %v1173 = vpop.xlane.xlu0 %1172
    %v1174 = vsel %vm108, %v1170, 0.0
    %1175 = vadd.xlane.f32.xlu0 %v1174
    %v1176 = vpop.xlane.xlu0 %1175
    %v1177 = vmul.f32 %v1173, %v1164
    %v1178 = vmul.f32 %v1176, %v1164
    %v1179 = vadd.f32 %v1177, 1e-05
    %v1180 = vadd.f32 %v1178, 1e-05
    %v1181 = vrsqrt.pop %v1179
    %v1182 = vrsqrt.pop %v1180
    %v1183 = vmul.f32 %v1167, %v1181
    %v1184 = vmul.f32 %v1168, %v1182
    %v1185 = vlaneseq
    %v1186 = vshrl.u32 %v1185, 7
    %v1187 = vsub.s32 1, %v1186
    %v1188 = vrot.slane %v77, %v1187
    %v1189 = vmul.f32 %v1183, %v1188
    %v1190 = vmul.f32 %v1184, %v1188
    %v1191 = vlaneseq
    %v1192 = vshrl.u32 %v1191, 7
    %v1193 = vsub.s32 2, %v1192
    %v1194 = vrot.slane %v77, %v1193
    %v1195 = vadd.f32 %v1189, %v1194
    %v1196 = vadd.f32 %v1190, %v1194
    %v1197 = vpack.c.bf16 %v1196, %v1195
    %v1198 = vlaneseq
    %v1199 = vshrl.u32 %v1198, 7
    %v1200 = vsub.s32 1, %v1199
    %v1201 = vrot.slane %v78, %v1200
    %v1206 = vunpack.c.l.b16 %v52
    %v1207 = vunpack.c.l.b16 %v53
    %v1208 = vunpack.c.l.b16 %v54
    %v1209 = vunpack.c.l.b16 %v55
    %v1210 = vpack.c.b16 %v1207, %v1206
    %v1211 = vpack.c.b16 %v1209, %v1208
    %v1215 = vsel %vm108, %v1197, 0
    %1217 = vmatprep.subr.bf16.mxu0 0
    %1218 = vmatpush1.bf16.msra.mxu0 %v1210
    %1219 = vmatprep.subr.bf16.mxu0 0
    %1220 = vmatpush1.bf16.msra.mxu0 %v1211
    %1221 = vmatprep.subr.bf16.mxu0 0
    %1222 = vmatpush1.bf16.msra.mxu0 0
    %1223 = vmatprep.subr.bf16.mxu0 0
    %1224 = vmatpush1.bf16.msra.mxu0 0
    %1225 = vmatprep.subr.bf16.mxu0 0
    %1226 = vmatpush1.bf16.msra.mxu0 0
    %1227 = vmatprep.subr.bf16.mxu0 0
    %1228 = vmatpush1.bf16.msra.mxu0 0
    %1229 = vmatprep.subr.bf16.mxu0 0
    %1230 = vmatpush1.bf16.msra.mxu0 0
    %1231 = vmatprep.subr.bf16.mxu0 0
    %1232 = vmatpush1.bf16.msra.mxu0 0
    %1233 = vmatprep.subr.bf16.mxu0 0
    %1234 = vmatpush1.bf16.msra.mxu0 0
    %1235 = vmatprep.subr.bf16.mxu0 0
    %1236 = vmatpush1.bf16.msra.mxu0 0
    %1237 = vmatprep.subr.bf16.mxu0 0
    %1238 = vmatpush1.bf16.msra.mxu0 0
    %1239 = vmatprep.subr.bf16.mxu0 0
    %1240 = vmatpush1.bf16.msra.mxu0 0
    %1241 = vmatprep.subr.bf16.mxu0 0
    %1242 = vmatpush1.bf16.msra.mxu0 0
    %1243 = vmatprep.subr.bf16.mxu0 0
    %1244 = vmatpush1.bf16.msra.mxu0 0
    %1245 = vmatprep.subr.bf16.mxu0 0
    %1246 = vmatpush1.bf16.msra.mxu0 0
    %1247 = vmatprep.subr.bf16.mxu0 0
    %1248 = vmatpush1.bf16.msra.mxu0 0
    %1249 = vmatprep.mubr.bf16.mxu0 0
    %1250 = vmatmul.mubr.bf16.gmra.mrb[0].mxu0 %v1215
    %v1251 = vpop.f32.mrb[0].mxu0
    %v1252 = vadd.f32 %v1201, %v1251
    %v1253 = vpop.f32.mrb[0].mxu0
    %v1254 = vpop.f32.mrb[0].mxu0
    %v1255 = vadd.f32 %v1201, %v1254
    %v1256 = vpop.f32.mrb[0].mxu0
    %1257 = vdwg.mxu0
    %v1258 = vmax.f32 %v1252, 0.0
    %v1259 = vmax.f32 %v1255, 0.0
    %v1260 = vpack.c.bf16 %v1259, %v1258
    %v1265 = vunpack.c.l.b16 %v57
    %v1266 = vunpack.c.l.b16 %v58
    %v1267 = vunpack.c.l.b16 %v59
    %v1268 = vunpack.c.l.b16 %v60
    %v1269 = vpack.c.b16 %v1266, %v1265
    %v1270 = vpack.c.b16 %v1268, %v1267
    %v1274 = vsel %vm108, %v1260, 0
    %1276 = vmatprep.subr.bf16.mxu0 0
    %1277 = vmatpush1.bf16.msra.mxu0 %v1269
    %1278 = vmatprep.subr.bf16.mxu0 0
    %1279 = vmatpush1.bf16.msra.mxu0 %v1270
    %1280 = vmatprep.subr.bf16.mxu0 0
    %1281 = vmatpush1.bf16.msra.mxu0 0
    %1282 = vmatprep.subr.bf16.mxu0 0
    %1283 = vmatpush1.bf16.msra.mxu0 0
    %1284 = vmatprep.subr.bf16.mxu0 0
    %1285 = vmatpush1.bf16.msra.mxu0 0
    %1286 = vmatprep.subr.bf16.mxu0 0
    %1287 = vmatpush1.bf16.msra.mxu0 0
    %1288 = vmatprep.subr.bf16.mxu0 0
    %1289 = vmatpush1.bf16.msra.mxu0 0
    %1290 = vmatprep.subr.bf16.mxu0 0
    %1291 = vmatpush1.bf16.msra.mxu0 0
    %1292 = vmatprep.subr.bf16.mxu0 0
    %1293 = vmatpush1.bf16.msra.mxu0 0
    %1294 = vmatprep.subr.bf16.mxu0 0
    %1295 = vmatpush1.bf16.msra.mxu0 0
    %1296 = vmatprep.subr.bf16.mxu0 0
    %1297 = vmatpush1.bf16.msra.mxu0 0
    %1298 = vmatprep.subr.bf16.mxu0 0
    %1299 = vmatpush1.bf16.msra.mxu0 0
    %1300 = vmatprep.subr.bf16.mxu0 0
    %1301 = vmatpush1.bf16.msra.mxu0 0
    %1302 = vmatprep.subr.bf16.mxu0 0
    %1303 = vmatpush1.bf16.msra.mxu0 0
    %1304 = vmatprep.subr.bf16.mxu0 0
    %1305 = vmatpush1.bf16.msra.mxu0 0
    %1306 = vmatprep.subr.bf16.mxu0 0
    %1307 = vmatpush1.bf16.msra.mxu0 0
    %1308 = vmatprep.mubr.bf16.mxu0 0
    %1309 = vmatmul.mubr.bf16.gmra.mrb[0].mxu0 %v1274
    %v1310 = vpop.f32.mrb[0].mxu0
    %v1311 = vadd.f32 0.0, %v1310
    %v1312 = vpop.f32.mrb[0].mxu0
    %v1313 = vpop.f32.mrb[0].mxu0
    %v1314 = vadd.f32 0.0, %v1313
    %v1315 = vpop.f32.mrb[0].mxu0
    %1316 = vdwg.mxu0
    %v1317 = vadd.f32 %v1195, %v1311
    %v1318 = vadd.f32 %v1196, %v1314
    %v1319 = vlaneseq
    %v1320 = vshrl.u32 %v1319, 7
    %v1321 = vsub.s32 2, %v1320
    %v1322 = vrot.slane %v78, %v1321
    %v1323 = vadd.f32 %v1317, %v1322
    %v1324 = vadd.f32 %v1318, %v1322
    %v1325 = vsel %vm108, %v1323, 0.0
    %1326 = vadd.xlane.f32.xlu0 %v1325
    %v1327 = vpop.xlane.xlu0 %1326
    %v1328 = vsel %vm108, %v1324, 0.0
    %1329 = vadd.xlane.f32.xlu0 %v1328
    %v1330 = vpop.xlane.xlu0 %1329
    %v1331 = vmul.f32 %v1327, %v1164
    %v1332 = vmul.f32 %v1330, %v1164
    %v1333 = vsub.f32 %v1323, %v1331
    %v1334 = vsub.f32 %v1324, %v1332
    %v1335 = vmul.f32 %v1333, %v1333
    %v1336 = vmul.f32 %v1334, %v1334
    %v1337 = vsel %vm108, %v1335, 0.0
    %1338 = vadd.xlane.f32.xlu0 %v1337
    %v1339 = vpop.xlane.xlu0 %1338
    %v1340 = vsel %vm108, %v1336, 0.0
    %1341 = vadd.xlane.f32.xlu0 %v1340
    %v1342 = vpop.xlane.xlu0 %1341
    %v1343 = vmul.f32 %v1339, %v1164
    %v1344 = vmul.f32 %v1342, %v1164
    %v1345 = vadd.f32 %v1343, 1e-05
    %v1346 = vadd.f32 %v1344, 1e-05
    %v1347 = vrsqrt.pop %v1345
    %v1348 = vrsqrt.pop %v1346
    %v1349 = vmul.f32 %v1333, %v1347
    %v1350 = vmul.f32 %v1334, %v1348
    %v1351 = vlaneseq
    %v1352 = vshrl.u32 %v1351, 7
    %v1353 = vsub.s32 3, %v1352
    %v1354 = vrot.slane %v77, %v1353
    %v1355 = vmul.f32 %v1349, %v1354
    %v1356 = vmul.f32 %v1350, %v1354
    %v1357 = vlaneseq
    %v1358 = vshrl.u32 %v1357, 7
    %v1359 = vsub.s32 4, %v1358
    %v1360 = vrot.slane %v77, %v1359
    %v1361 = vadd.f32 %v1355, %v1360
    %v1362 = vadd.f32 %v1356, %v1360
    %1364 = vset.pattern.permute.xlu0 0
    %1365 = vperm.xlu0 %1364, %v87
    %v1366 = vpop.permute.xlu0 %1365
    %1369 = vset.pattern.permute.xlu0 0
    %1370 = vperm.xlu0 %1369, %v88
    %v1371 = vpop.permute.xlu0 %1370
    %v1373 = vmul.f32 %v1361, %v1366
    %v1374 = vmul.f32 %v1362, %v1371
    %v1375 = vpack.c.bf16 %v1374, %v1373
    %v1377 = vlaneseq
    %v1378 = vshrl.u32 %v1377, 7
    %v1379 = vsub.s32 0, %v1378
    %v1380 = vrot.slane %v46, %v1379
    %v1386 = vunpack.c.l.b16 %v42
    %v1387 = vunpack.c.l.b16 %v43
    %v1388 = vunpack.c.l.b16 %v44
    %v1389 = vunpack.c.l.b16 %v45
    %v1390 = vpack.c.b16 %v1387, %v1386
    %v1391 = vpack.c.b16 %v1389, %v1388
    %v1395 = vsel %vm108, %v1375, 0
    %1397 = vmatprep.subr.bf16.mxu0 0
    %1398 = vmatpush1.bf16.msra.mxu0 %v1390
    %1399 = vmatprep.subr.bf16.mxu0 0
    %1400 = vmatpush1.bf16.msra.mxu0 %v1391
    %1401 = vmatprep.subr.bf16.mxu0 0
    %1402 = vmatpush1.bf16.msra.mxu0 0
    %1403 = vmatprep.subr.bf16.mxu0 0
    %1404 = vmatpush1.bf16.msra.mxu0 0
    %1405 = vmatprep.subr.bf16.mxu0 0
    %1406 = vmatpush1.bf16.msra.mxu0 0
    %1407 = vmatprep.subr.bf16.mxu0 0
    %1408 = vmatpush1.bf16.msra.mxu0 0
    %1409 = vmatprep.subr.bf16.mxu0 0
    %1410 = vmatpush1.bf16.msra.mxu0 0
    %1411 = vmatprep.subr.bf16.mxu0 0
    %1412 = vmatpush1.bf16.msra.mxu0 0
    %1413 = vmatprep.subr.bf16.mxu0 0
    %1414 = vmatpush1.bf16.msra.mxu0 0
    %1415 = vmatprep.subr.bf16.mxu0 0
    %1416 = vmatpush1.bf16.msra.mxu0 0
    %1417 = vmatprep.subr.bf16.mxu0 0
    %1418 = vmatpush1.bf16.msra.mxu0 0
    %1419 = vmatprep.subr.bf16.mxu0 0
    %1420 = vmatpush1.bf16.msra.mxu0 0
    %1421 = vmatprep.subr.bf16.mxu0 0
    %1422 = vmatpush1.bf16.msra.mxu0 0
    %1423 = vmatprep.subr.bf16.mxu0 0
    %1424 = vmatpush1.bf16.msra.mxu0 0
    %1425 = vmatprep.subr.bf16.mxu0 0
    %1426 = vmatpush1.bf16.msra.mxu0 0
    %1427 = vmatprep.subr.bf16.mxu0 0
    %1428 = vmatpush1.bf16.msra.mxu0 0
    %1429 = vmatprep.mubr.bf16.mxu0 0
    %1430 = vmatmul.mubr.bf16.gmra.mrb[0].mxu0 %v1395
    %v1431 = vpop.f32.mrb[0].mxu0
    %v1432 = vadd.f32 %v1380, %v1431
    %v1433 = vpop.f32.mrb[0].mxu0
    %v1434 = vpop.f32.mrb[0].mxu0
    %v1435 = vadd.f32 %v1380, %v1434
    %v1436 = vpop.f32.mrb[0].mxu0
    %1437 = vdwg.mxu0
    %v1438 = vmul.f32 %v1432, 0.5
    %v1439 = vmul.f32 %v1435, 0.5
    %v1440 = vtanh.pop %v1438
    %v1441 = vtanh.pop %v1439
    %v1442 = vmul.f32 %v1440, 0.5
    %v1443 = vmul.f32 %v1441, 0.5
    %v1444 = vadd.f32 %v1442, 0.5
    %v1445 = vadd.f32 %v1443, 0.5
    %1448 = vrot.lane.b32.xlu0 %v1444, 96
    %v1449 = vpop.permute.xlu0 %1448
    %1450 = vrot.lane.b32.xlu0 %v1445, 96
    %v1451 = vpop.permute.xlu0 %1450
    %v1454 = vmul.f32 %v1432, %v1449
    %v1455 = vmul.f32 %v1435, %v1451
    %v1456 = vlaneseq
    %v1457 = vshrl.u32 %v1456, 7
    %v1458 = vlaneseq
    %v1459 = vshrl.u32 %v1458, 7
    %v1460 = vsub.s32 1, %v1459
    %v1461 = vrot.slane %v76, %v1460
    %v1462 = vmul.f32 %v1454, %v1461
    %v1463 = vmul.f32 %v1455, %v1461
    %v1464 = vlaneseq
    %v1465 = vshrl.u32 %v1464, 7
    %v1466 = vsub.s32 5, %v1465
    %v1467 = vrot.slane %v78, %v1466
    %v1468 = vadd.f32 %v1462, %v1467
    %v1469 = vadd.f32 %v1463, %v1467
    %v1470 = vrot.slane %v1454, 7
    %v1471 = vrot.slane %v1455, 7
    %vm1472 = vcmp.lt.s32.totalorder %v1457, 1
    %v1473 = vsel %vm1472, %v1470, %v1471
    %v1474 = vsel %vm1472, %v1471, %v1470
    %vm1475 = vcmp.ge.s32.totalorder %v1457, 1
    %v1476 = vsel %vm1475, 1, 0
    %v1477 = vcvt.s32.f32 %v1476
    %v1478 = vlaneseq
    %v1479 = vshrl.u32 %v1478, 7
    %v1480 = vsub.s32 0, %v1479
    %v1481 = vrot.slane %v76, %v1480
    %v1482 = vmul.f32 %v1477, %v1481
    %v1483 = vmul.f32 %v1474, %v1482
    %v1484 = vmul.f32 %v1473, %v1482
    %v1485 = vadd.f32 %v1468, %v1483
    %v1486 = vadd.f32 %v1469, %v1484
    %v1487 = vrot.slane %v1454, 1
    %v1488 = vrot.slane %v1455, 1
    %vm1489 = vcmp.lt.s32.totalorder %v1457, 7
    %v1490 = vsel %vm1489, %v1487, %v1488
    %v1491 = vsel %vm1489, %v1488, %v1487
    %vm1492 = vcmp.le.s32.totalorder %v1457, 6
    %v1493 = vsel %vm1492, 1, 0
    %v1494 = vcvt.s32.f32 %v1493
    %v1495 = vlaneseq
    %v1496 = vshrl.u32 %v1495, 7
    %v1497 = vsub.s32 2, %v1496
    %v1498 = vrot.slane %v76, %v1497
    %v1499 = vmul.f32 %v1494, %v1498
    %v1500 = vmul.f32 %v1490, %v1499
    %v1501 = vmul.f32 %v1491, %v1499
    %v1502 = vadd.f32 %v1485, %v1500
    %v1503 = vadd.f32 %v1486, %v1501
    %v1504 = vmul.f32 %v1502, 0.5
    %v1505 = vmul.f32 %v1503, 0.5
    %v1506 = vtanh.pop %v1504
    %v1507 = vtanh.pop %v1505
    %v1508 = vmul.f32 %v1506, 0.5
    %v1509 = vmul.f32 %v1507, 0.5
    %v1510 = vadd.f32 %v1508, 0.5
    %v1511 = vadd.f32 %v1509, 0.5
    %v1512 = vmul.f32 %v1502, %v1510
    %v1513 = vmul.f32 %v1503, %v1511
    %v1514 = vpack.c.bf16 %v1513, %v1512
    %v1515 = vlaneseq
    %v1516 = vshrl.u32 %v1515, 7
    %v1517 = vsub.s32 6, %v1516
    %v1518 = vrot.slane %v78, %v1517
    %v1523 = vunpack.c.l.b16 %v72
    %v1524 = vunpack.c.l.b16 %v73
    %v1525 = vunpack.c.l.b16 %v74
    %v1526 = vunpack.c.l.b16 %v75
    %v1527 = vpack.c.b16 %v1524, %v1523
    %v1528 = vpack.c.b16 %v1526, %v1525
    %v1532 = vsel %vm108, %v1514, 0
    %1534 = vmatprep.subr.bf16.mxu0 0
    %1535 = vmatpush1.bf16.msra.mxu0 %v1527
    %1536 = vmatprep.subr.bf16.mxu0 0
    %1537 = vmatpush1.bf16.msra.mxu0 %v1528
    %1538 = vmatprep.subr.bf16.mxu0 0
    %1539 = vmatpush1.bf16.msra.mxu0 0
    %1540 = vmatprep.subr.bf16.mxu0 0
    %1541 = vmatpush1.bf16.msra.mxu0 0
    %1542 = vmatprep.subr.bf16.mxu0 0
    %1543 = vmatpush1.bf16.msra.mxu0 0
    %1544 = vmatprep.subr.bf16.mxu0 0
    %1545 = vmatpush1.bf16.msra.mxu0 0
    %1546 = vmatprep.subr.bf16.mxu0 0
    %1547 = vmatpush1.bf16.msra.mxu0 0
    %1548 = vmatprep.subr.bf16.mxu0 0
    %1549 = vmatpush1.bf16.msra.mxu0 0
    %1550 = vmatprep.subr.bf16.mxu0 0
    %1551 = vmatpush1.bf16.msra.mxu0 0
    %1552 = vmatprep.subr.bf16.mxu0 0
    %1553 = vmatpush1.bf16.msra.mxu0 0
    %1554 = vmatprep.subr.bf16.mxu0 0
    %1555 = vmatpush1.bf16.msra.mxu0 0
    %1556 = vmatprep.subr.bf16.mxu0 0
    %1557 = vmatpush1.bf16.msra.mxu0 0
    %1558 = vmatprep.subr.bf16.mxu0 0
    %1559 = vmatpush1.bf16.msra.mxu0 0
    %1560 = vmatprep.subr.bf16.mxu0 0
    %1561 = vmatpush1.bf16.msra.mxu0 0
    %1562 = vmatprep.subr.bf16.mxu0 0
    %1563 = vmatpush1.bf16.msra.mxu0 0
    %1564 = vmatprep.subr.bf16.mxu0 0
    %1565 = vmatpush1.bf16.msra.mxu0 0
    %1566 = vmatprep.mubr.bf16.mxu0 0
    %1567 = vmatmul.mubr.bf16.gmra.mrb[0].mxu0 %v1532
    %v1568 = vpop.f32.mrb[0].mxu0
    %v1569 = vadd.f32 %v1518, %v1568
    %v1570 = vpop.f32.mrb[0].mxu0
    %v1571 = vpop.f32.mrb[0].mxu0
    %v1572 = vadd.f32 %v1518, %v1571
    %v1573 = vpop.f32.mrb[0].mxu0
    %1574 = vdwg.mxu0
    %v1575 = vmul.f32 %v1569, %v1366
    %v1576 = vmul.f32 %v1572, %v1371
    %v1577 = vadd.f32 %v1361, %v1575
    %v1578 = vadd.f32 %v1362, %v1576
    %v1579 = vsel %vm108, %v1577, 0.0
    %1580 = vadd.xlane.f32.xlu0 %v1579
    %v1581 = vpop.xlane.xlu0 %1580
    %v1582 = vsel %vm108, %v1578, 0.0
    %1583 = vadd.xlane.f32.xlu0 %v1582
    %v1584 = vpop.xlane.xlu0 %1583
    %v1585 = vmul.f32 %v1581, %v1164
    %v1586 = vmul.f32 %v1584, %v1164
    %v1587 = vsub.f32 %v1577, %v1585
    %v1588 = vsub.f32 %v1578, %v1586
    %v1589 = vmul.f32 %v1587, %v1587
    %v1590 = vmul.f32 %v1588, %v1588
    %v1591 = vsel %vm108, %v1589, 0.0
    %1592 = vadd.xlane.f32.xlu0 %v1591
    %v1593 = vpop.xlane.xlu0 %1592
    %v1594 = vsel %vm108, %v1590, 0.0
    %1595 = vadd.xlane.f32.xlu0 %v1594
    %v1596 = vpop.xlane.xlu0 %1595
    %v1597 = vmul.f32 %v1593, %v1164
    %v1598 = vmul.f32 %v1596, %v1164
    %v1599 = vadd.f32 %v1597, 1e-05
    %v1600 = vadd.f32 %v1598, 1e-05
    %v1601 = vrsqrt.pop %v1599
    %v1602 = vrsqrt.pop %v1600
    %v1603 = vmul.f32 %v1587, %v1601
    %v1604 = vmul.f32 %v1588, %v1602
    %v1605 = vlaneseq
    %v1606 = vshrl.u32 %v1605, 7
    %v1607 = vsub.s32 5, %v1606
    %v1608 = vrot.slane %v77, %v1607
    %v1609 = vmul.f32 %v1603, %v1608
    %v1610 = vmul.f32 %v1604, %v1608
    %v1611 = vlaneseq
    %v1612 = vshrl.u32 %v1611, 7
    %v1613 = vsub.s32 6, %v1612
    %v1614 = vrot.slane %v77, %v1613
    %v1615 = vadd.f32 %v1609, %v1614
    %v1616 = vadd.f32 %v1610, %v1614
    %v1617 = vpack.c.bf16 %v1616, %v1615
    %v1618 = vlaneseq
    %v1619 = vshrl.u32 %v1618, 7
    %v1620 = vsub.s32 3, %v1619
    %v1621 = vrot.slane %v78, %v1620
    %v1626 = vunpack.c.l.b16 %v62
    %v1627 = vunpack.c.l.b16 %v63
    %v1628 = vunpack.c.l.b16 %v64
    %v1629 = vunpack.c.l.b16 %v65
    %v1630 = vpack.c.b16 %v1627, %v1626
    %v1631 = vpack.c.b16 %v1629, %v1628
    %v1635 = vsel %vm108, %v1617, 0
    %1637 = vmatprep.subr.bf16.mxu0 0
    %1638 = vmatpush1.bf16.msra.mxu0 %v1630
    %1639 = vmatprep.subr.bf16.mxu0 0
    %1640 = vmatpush1.bf16.msra.mxu0 %v1631
    %1641 = vmatprep.subr.bf16.mxu0 0
    %1642 = vmatpush1.bf16.msra.mxu0 0
    %1643 = vmatprep.subr.bf16.mxu0 0
    %1644 = vmatpush1.bf16.msra.mxu0 0
    %1645 = vmatprep.subr.bf16.mxu0 0
    %1646 = vmatpush1.bf16.msra.mxu0 0
    %1647 = vmatprep.subr.bf16.mxu0 0
    %1648 = vmatpush1.bf16.msra.mxu0 0
    %1649 = vmatprep.subr.bf16.mxu0 0
    %1650 = vmatpush1.bf16.msra.mxu0 0
    %1651 = vmatprep.subr.bf16.mxu0 0
    %1652 = vmatpush1.bf16.msra.mxu0 0
    %1653 = vmatprep.subr.bf16.mxu0 0
    %1654 = vmatpush1.bf16.msra.mxu0 0
    %1655 = vmatprep.subr.bf16.mxu0 0
    %1656 = vmatpush1.bf16.msra.mxu0 0
    %1657 = vmatprep.subr.bf16.mxu0 0
    %1658 = vmatpush1.bf16.msra.mxu0 0
    %1659 = vmatprep.subr.bf16.mxu0 0
    %1660 = vmatpush1.bf16.msra.mxu0 0
    %1661 = vmatprep.subr.bf16.mxu0 0
    %1662 = vmatpush1.bf16.msra.mxu0 0
    %1663 = vmatprep.subr.bf16.mxu0 0
    %1664 = vmatpush1.bf16.msra.mxu0 0
    %1665 = vmatprep.subr.bf16.mxu0 0
    %1666 = vmatpush1.bf16.msra.mxu0 0
    %1667 = vmatprep.subr.bf16.mxu0 0
    %1668 = vmatpush1.bf16.msra.mxu0 0
    %1669 = vmatprep.mubr.bf16.mxu0 0
    %1670 = vmatmul.mubr.bf16.gmra.mrb[0].mxu0 %v1635
    %v1671 = vpop.f32.mrb[0].mxu0
    %v1672 = vadd.f32 %v1621, %v1671
    %v1673 = vpop.f32.mrb[0].mxu0
    %v1674 = vpop.f32.mrb[0].mxu0
    %v1675 = vadd.f32 %v1621, %v1674
    %v1676 = vpop.f32.mrb[0].mxu0
    %1677 = vdwg.mxu0
    %v1678 = vmax.f32 %v1672, 0.0
    %v1679 = vmax.f32 %v1675, 0.0
    %v1680 = vpack.c.bf16 %v1679, %v1678
    %v1685 = vunpack.c.l.b16 %v67
    %v1686 = vunpack.c.l.b16 %v68
    %v1687 = vunpack.c.l.b16 %v69
    %v1688 = vunpack.c.l.b16 %v70
    %v1689 = vpack.c.b16 %v1686, %v1685
    %v1690 = vpack.c.b16 %v1688, %v1687
    %v1694 = vsel %vm108, %v1680, 0
    %1696 = vmatprep.subr.bf16.mxu0 0
    %1697 = vmatpush1.bf16.msra.mxu0 %v1689
    %1698 = vmatprep.subr.bf16.mxu0 0
    %1699 = vmatpush1.bf16.msra.mxu0 %v1690
    %1700 = vmatprep.subr.bf16.mxu0 0
    %1701 = vmatpush1.bf16.msra.mxu0 0
    %1702 = vmatprep.subr.bf16.mxu0 0
    %1703 = vmatpush1.bf16.msra.mxu0 0
    %1704 = vmatprep.subr.bf16.mxu0 0
    %1705 = vmatpush1.bf16.msra.mxu0 0
    %1706 = vmatprep.subr.bf16.mxu0 0
    %1707 = vmatpush1.bf16.msra.mxu0 0
    %1708 = vmatprep.subr.bf16.mxu0 0
    %1709 = vmatpush1.bf16.msra.mxu0 0
    %1710 = vmatprep.subr.bf16.mxu0 0
    %1711 = vmatpush1.bf16.msra.mxu0 0
    %1712 = vmatprep.subr.bf16.mxu0 0
    %1713 = vmatpush1.bf16.msra.mxu0 0
    %1714 = vmatprep.subr.bf16.mxu0 0
    %1715 = vmatpush1.bf16.msra.mxu0 0
    %1716 = vmatprep.subr.bf16.mxu0 0
    %1717 = vmatpush1.bf16.msra.mxu0 0
    %1718 = vmatprep.subr.bf16.mxu0 0
    %1719 = vmatpush1.bf16.msra.mxu0 0
    %1720 = vmatprep.subr.bf16.mxu0 0
    %1721 = vmatpush1.bf16.msra.mxu0 0
    %1722 = vmatprep.subr.bf16.mxu0 0
    %1723 = vmatpush1.bf16.msra.mxu0 0
    %1724 = vmatprep.subr.bf16.mxu0 0
    %1725 = vmatpush1.bf16.msra.mxu0 0
    %1726 = vmatprep.subr.bf16.mxu0 0
    %1727 = vmatpush1.bf16.msra.mxu0 0
    %1728 = vmatprep.mubr.bf16.mxu0 0
    %1729 = vmatmul.mubr.bf16.gmra.mrb[0].mxu0 %v1694
    %v1730 = vpop.f32.mrb[0].mxu0
    %v1731 = vadd.f32 0.0, %v1730
    %v1732 = vpop.f32.mrb[0].mxu0
    %v1733 = vpop.f32.mrb[0].mxu0
    %v1734 = vadd.f32 0.0, %v1733
    %v1735 = vpop.f32.mrb[0].mxu0
    %1736 = vdwg.mxu0
    %v1737 = vadd.f32 %v1615, %v1731
    %v1738 = vadd.f32 %v1616, %v1734
    %v1739 = vlaneseq
    %v1740 = vshrl.u32 %v1739, 7
    %v1741 = vsub.s32 4, %v1740
    %v1742 = vrot.slane %v78, %v1741
    %v1743 = vadd.f32 %v1737, %v1742
    %v1744 = vadd.f32 %v1738, %v1742
    %v1745 = vsel %vm108, %v1743, 0.0
    %1746 = vadd.xlane.f32.xlu0 %v1745
    %v1747 = vpop.xlane.xlu0 %1746
    %v1748 = vsel %vm108, %v1744, 0.0
    %1749 = vadd.xlane.f32.xlu0 %v1748
    %v1750 = vpop.xlane.xlu0 %1749
    %v1751 = vmul.f32 %v1747, %v1164
    %v1752 = vmul.f32 %v1750, %v1164
    %v1753 = vsub.f32 %v1743, %v1751
    %v1754 = vsub.f32 %v1744, %v1752
    %v1755 = vmul.f32 %v1753, %v1753
    %v1756 = vmul.f32 %v1754, %v1754
    %v1757 = vsel %vm108, %v1755, 0.0
    %1758 = vadd.xlane.f32.xlu0 %v1757
    %v1759 = vpop.xlane.xlu0 %1758
    %v1760 = vsel %vm108, %v1756, 0.0
    %1761 = vadd.xlane.f32.xlu0 %v1760
    %v1762 = vpop.xlane.xlu0 %1761
    %v1763 = vmul.f32 %v1759, %v1164
    %v1764 = vmul.f32 %v1762, %v1164
    %v1765 = vadd.f32 %v1763, 1e-05
    %v1766 = vadd.f32 %v1764, 1e-05
    %v1767 = vrsqrt.pop %v1765
    %v1768 = vrsqrt.pop %v1766
    %v1769 = vmul.f32 %v1753, %v1767
    %v1770 = vmul.f32 %v1754, %v1768
    %v1771 = vlaneseq
    %v1772 = vshrl.u32 %v1771, 7
    %v1773 = vsub.s32 7, %v1772
    %v1774 = vrot.slane %v77, %v1773
    %v1775 = vmul.f32 %v1769, %v1774
    %v1776 = vmul.f32 %v1770, %v1774
    %v1777 = vlaneseq
    %v1778 = vshrl.u32 %v1777, 7
    %v1779 = vsub.s32 0, %v1778
    %v1780 = vrot.slane %v78, %v1779
    %v1781 = vadd.f32 %v1775, %v1780
    %v1782 = vadd.f32 %v1776, %v1780
    %1783 = vst.msk [vmem:[#allocation2] sm:$0xff] %vm108, %v1781
    %1784 = vst.msk [vmem:[#allocation2 + $0x8] sm:$0xff] %vm108, %v1782
    // Predicated region
    $region42: #{squeezeformer_layer.1} parent=1 // pred_check
      _
    $region43: #{squeezeformer_layer.1} parent=1 // pred_check_branch
      %1786 = sbr.rel (0) target = $region45
    $region44: #{squeezeformer_layer.1} parent=1 // pred_region
      %s1788 = ssub.s32 256, 256
      %1789 = vsyncadd [#allocation3], %s1788
      %s1790 = sshll.u32 [#allocation2], 4
      %s1791 = int_to_ptr.vmem [resolvable:$true] %s1790
      %1796 = dma.vmem_to_hbm [thread:$0]  %s1791, 256, %s10, [#allocation3], 128, 128, 8
    $region45: #{squeezeformer_layer.1} parent=1 // pred_fallthru
      _
    // Predicated region
    $region46: #{squeezeformer_layer.1} parent=1 // pred_check
      _
    $region47: #{squeezeformer_layer.1} parent=1 // pred_check_branch
      %1798 = sbr.rel (0) target = $region49
    $region48: #{squeezeformer_layer.1} parent=1 // pred_region
      %1799 = dma.done [#allocation3], 256
    $region49: #{squeezeformer_layer.1} parent=1 // pred_fallthru
      _
    %1800 = vsyncpa [#allocation3], 1

</llo_original>
